<compile_context>
chip_gen: v6e
topology: v6e:2x2x1
jax: 0.10.0
libtpu: 0.0.40
codegen_flags: <defaults>
</compile_context>

<pallas_src>
import functools

import numpy as np
import jax
import jax.numpy as jnp
from jax.experimental import pallas as pl
from jax.experimental.pallas import tpu as pltpu


LANE = 128
BN_EPS = 1e-5

KYTE_DOOLITTLE = {
    'A': 1.8, 'C': 2.5, 'D': -3.5, 'E': -3.5, 'F': 2.8, 'G': -0.4, 'H': -3.2,
    'I': 4.5, 'K': -3.9, 'L': 3.8, 'M': 1.9, 'N': -3.5, 'P': -1.6, 'Q': -3.5,
    'R': -4.5, 'S': -0.8, 'T': -0.7, 'V': 4.2, 'W': -0.9, 'Y': -1.3,
}


# ---------------------------------------------------------------------------
# Kernel 1: Linear1 + ReLU, per-tile BatchNorm partial sums (both axes parallel)
# ---------------------------------------------------------------------------

def stats_kernel(xt_ref, w1t_ref, b1_ref, sum_ref, ssq_ref, *, seq_len, tile_s):
    s = pl.program_id(1)
    last = pl.num_programs(1) - 1

    # (H, F) @ (F, TILE_S): tokens stay lane-dense.
    h1 = jnp.maximum(
        jnp.dot(w1t_ref[...], xt_ref[...], preferred_element_type=jnp.float32)
        + b1_ref[...], 0.0)

    # Padding columns only exist in the last tile -> mask only there.
    @pl.when(s != last)
    def _():
        sum_ref[...] = jnp.sum(h1, axis=1, keepdims=True)
        ssq_ref[...] = jnp.sum(h1 * h1, axis=1, keepdims=True)

    @pl.when(s == last)
    def _():
        col = jax.lax.broadcasted_iota(jnp.int32, (1, tile_s), 1) + s * tile_s
        hm = jnp.where(col < seq_len, h1, 0.0)
        sum_ref[...] = jnp.sum(hm, axis=1, keepdims=True)
        ssq_ref[...] = jnp.sum(hm * hm, axis=1, keepdims=True)


# ---------------------------------------------------------------------------
# Kernel 2: encoder tail, seq-tiled (recompute Linear1; no h1t round trip)
# ---------------------------------------------------------------------------

def tail_kernel(xt_ref, w1t_ref, b1_ref, scale_ref, shift_ref, w2t_ref, b2_ref,
                w3_ref, b3_ref, pred_ref):
    h1 = jnp.maximum(
        jnp.dot(w1t_ref[...], xt_ref[...], preferred_element_type=jnp.float32)
        + b1_ref[...], 0.0)                                      # (H, tile_s)
    h1n = h1 * scale_ref[...] + shift_ref[...]                   # BN affine
    h2 = jnp.maximum(
        jnp.dot(w2t_ref[...], h1n, preferred_element_type=jnp.float32)
        + b2_ref[...], 0.0)                                      # (H2, tile_s)
    # Linear3 (H2 -> 1): VPU multiply + sublane reduce; result stays lane-dense.
    p = jnp.tanh(jnp.sum(h2 * w3_ref[...], axis=0, keepdims=True) + b3_ref[0])
    pred_ref[...] = p                                            # (1, tile_s)


# ---------------------------------------------------------------------------
# Kernel 3: Conv1d cluster detector (lane-dense rows, roll-based taps,
#           16->8 channel contraction on the MXU)
# ---------------------------------------------------------------------------

def cluster_kernel(pred_ref, cw1_ref, cb1_ref, cw2_ref, cb2_ref, cw3_ref,
                   cb3_ref, clus_ref, *, seq_len):
    s_pad = pred_ref.shape[-1]
    p = pred_ref[...]                                            # (1, s_pad)

    # Hoisted edge masks for every tap offset used below (Conv zero padding
    # semantics: anything outside [0, seq_len) contributes 0).
    lane = jax.lax.broadcasted_iota(jnp.int32, (1, s_pad), 1)
    masks = {d: (lane + d >= 0) & (lane + d < seq_len) for d in range(-2, 3)}

    def tap(x, d):
        rolled = x if d == 0 else pltpu.roll(x, (-d) % s_pad, axis=1)
        return jnp.where(masks[d], rolled, 0.0)

    cw1 = cw1_ref[...]        # (16, 5)    [out, tap]
    cw2 = cw2_ref[...]        # (3, 8, 16) [tap, out, in]
    cw3 = cw3_ref[...]        # (8, 3)     [in, tap]

    # Conv1d(1 -> 16, k=5, pad=2) + ReLU : 5 VPU broadcast FMAs (tiny).
    y1 = jnp.zeros((16, s_pad), jnp.float32)
    for t in range(5):
        y1 = y1 + cw1[:, t:t + 1] * tap(p, t - 2)
    y1 = jnp.maximum(y1 + cb1_ref[...], 0.0)                     # (16, s_pad)

    # Conv1d(16 -> 8, k=3, pad=1) + ReLU : per-tap MXU channel contraction.
    acc2 = jnp.zeros((8, s_pad), jnp.float32)
    for t in range(3):
        acc2 = acc2 + jnp.dot(cw2[t], tap(y1, t - 1),
                              preferred_element_type=jnp.float32)
    y2 = jnp.maximum(acc2 + cb2_ref[...], 0.0)                   # (8, s_pad)

    # Conv1d(8 -> 1, k=3, pad=1) + Sigmoid : VPU multiply + sublane reduce.
    acc3 = jnp.zeros((1, s_pad), jnp.float32)
    for t in range(3):
        acc3 = acc3 + jnp.sum(tap(y2, t - 1) * cw3[:, t:t + 1],
                              axis=0, keepdims=True)
    clus_ref[...] = jax.nn.sigmoid(acc3 + cb3_ref[0])            # (1, s_pad)


# ---------------------------------------------------------------------------
# Wrappers
# ---------------------------------------------------------------------------

def _tpu_tuning():
    """Per-generation (max_seq_tile, vmem_budget_cap_bytes)."""
    vmem_cap = 64 << 20                       # conservative default (v7x-like)
    try:
        info = pltpu.get_tpu_info()
        vmem_cap = int(getattr(info, 'vmem_capacity_bytes', vmem_cap))
    except Exception:
        pass
    if vmem_cap >= (100 << 20):               # v5e / v6e: 128 MiB VMEM
        return 1024, (96 << 20)
    return 512, (48 << 20)                    # v7x: 64 MiB VMEM


def _choose_seq_tiling(seq_len, max_tile):
    """Pad the sequence UP to a multiple of the target tile (never shrink the
    tile to a divisor); the seq_len mask keeps statistics exact."""
    s128 = ((seq_len + LANE - 1) // LANE) * LANE
    if s128 <= max_tile:
        return s128, s128                     # single tile
    s_pad = ((s128 + max_tile - 1) // max_tile) * max_tile
    return s_pad, max_tile


def _vmem_budget(estimate_bytes, cap_bytes):
    return int(min(max(estimate_bytes + (8 << 20), 16 << 20), cap_bytes))


@jax.jit
def hydrophobic_forward_core(features, params):
    B, S, F = features.shape
    H = params['w1'].shape[1]
    H2 = H // 2

    max_tile, vmem_cap = _tpu_tuning()
    s_pad, tile_s = _choose_seq_tiling(S, max_tile)
    n_s_tiles = s_pad // tile_s

    # Lane-dense token layout: [B, F, S_pad] (transpose/pad are XLA-side).
    xt = jnp.transpose(features, (0, 2, 1))
    if s_pad != S:
        xt = jnp.pad(xt, ((0, 0), (0, 0), (0, s_pad - S)))

    w1t = params['w1'].T                      # (H, F)
    b1c = params['b1'][:, None]               # (H, 1)

    # ---- pass 1: BatchNorm batch statistics (per-tile partial sums) -------
    vmem1 = 4 * (2 * F * tile_s + 2 * H * F + 4 * H * tile_s + 16 * H)
    psum, pssq = pl.pallas_call(
        functools.partial(stats_kernel, seq_len=S, tile_s=tile_s),
        out_shape=(jax.ShapeDtypeStruct((B * n_s_tiles, H, 1), jnp.float32),
                   jax.ShapeDtypeStruct((B * n_s_tiles, H, 1), jnp.float32)),
        grid=(B, n_s_tiles),
        in_specs=[
            pl.BlockSpec((None, F, tile_s), lambda b, s: (b, 0, s)),
            pl.BlockSpec((H, F), lambda b, s: (0, 0)),
            pl.BlockSpec((H, 1), lambda b, s: (0, 0)),
        ],
        out_specs=(
            pl.BlockSpec((None, H, 1), lambda b, s: (b * n_s_tiles + s, 0, 0)),
            pl.BlockSpec((None, H, 1), lambda b, s: (b * n_s_tiles + s, 0, 0)),
        ),
        compiler_params=pltpu.CompilerParams(
            dimension_semantics=("parallel", "parallel"),
            vmem_limit_bytes=_vmem_budget(vmem1, vmem_cap)),
    )(xt, w1t, b1c)

    # BatchNorm1d (training mode) over all B*S rows: biased variance, eps=1e-5.
    n_tok = float(B * S)
    mean = jnp.sum(psum[..., 0], axis=0) / n_tok                  # (H,)
    var = jnp.sum(pssq[..., 0], axis=0) / n_tok - mean * mean
    var = jnp.maximum(var, 0.0)               # f32 cancellation guard
    rstd = jax.lax.rsqrt(var + BN_EPS)
    scale = (params['gamma'] * rstd)[:, None]                     # (H, 1)
    shift = (params['beta'] - params['gamma'] * rstd * mean)[:, None]

    # ---- pass 2: encoder tail (recompute Linear1), seq-tiled --------------
    vmem2 = 4 * (2 * F * tile_s + 2 * H * F + 2 * H2 * H
                 + 3 * H * tile_s + 2 * H2 * tile_s + 4 * tile_s
                 + 16 * (H + H2))
    pred_rows = pl.pallas_call(
        tail_kernel,
        out_shape=jax.ShapeDtypeStruct((B, 1, s_pad), jnp.float32),
        grid=(B, n_s_tiles),
        in_specs=[
            pl.BlockSpec((None, F, tile_s), lambda b, s: (b, 0, s)),   # xt
            pl.BlockSpec((H, F), lambda b, s: (0, 0)),                 # w1t
            pl.BlockSpec((H, 1), lambda b, s: (0, 0)),                 # b1
            pl.BlockSpec((H, 1), lambda b, s: (0, 0)),                 # scale
            pl.BlockSpec((H, 1), lambda b, s: (0, 0)),                 # shift
            pl.BlockSpec((H2, H), lambda b, s: (0, 0)),                # w2t
            pl.BlockSpec((H2, 1), lambda b, s: (0, 0)),                # b2
            pl.BlockSpec((H2, 1), lambda b, s: (0, 0)),                # w3
            pl.BlockSpec(memory_space=pltpu.MemorySpace.SMEM),         # b3
        ],
        out_specs=pl.BlockSpec((None, 1, tile_s), lambda b, s: (b, 0, s)),
        compiler_params=pltpu.CompilerParams(
            dimension_semantics=("parallel", "parallel"),
            vmem_limit_bytes=_vmem_budget(vmem2, vmem_cap)),
    )(xt, w1t, b1c, scale, shift,
      params['w2'].T, params['b2'][:, None], params['w3'], params['b3'])

    # ---- pass 3: Conv1d cluster detector (tiny lane-dense rows) -----------
    vmem3 = 4 * (4 * s_pad + 48 * s_pad + 24 * s_pad + 4096)
    clus_rows = pl.pallas_call(
        functools.partial(cluster_kernel, seq_len=S),
        out_shape=jax.ShapeDtypeStruct((B, 1, s_pad), jnp.float32),
        grid=(B,),
        in_specs=[
            pl.BlockSpec((None, 1, s_pad), lambda b: (b, 0, 0)),       # pred
            pl.BlockSpec((16, 5), lambda b: (0, 0)),                   # cw1
            pl.BlockSpec((16, 1), lambda b: (0, 0)),                   # cb1
            pl.BlockSpec((3, 8, 16), lambda b: (0, 0, 0)),             # cw2
            pl.BlockSpec((8, 1), lambda b: (0, 0)),                    # cb2
            pl.BlockSpec((8, 3), lambda b: (0, 0)),                    # cw3
            pl.BlockSpec(memory_space=pltpu.MemorySpace.SMEM),         # cb3
        ],
        out_specs=pl.BlockSpec((None, 1, s_pad), lambda b: (b, 0, 0)),
        compiler_params=pltpu.CompilerParams(
            dimension_semantics=("parallel",),
            vmem_limit_bytes=_vmem_budget(vmem3, vmem_cap)),
    )(pred_rows,
      params['cw1'].T, params['cb1'][:, None],
      jnp.transpose(params['cw2'], (0, 2, 1)), params['cb2'][:, None],
      params['cw3'].T, params['cb3'])

    predicted = pred_rows[:, 0, :S][..., None]                    # [B, S, 1]
    clusters = clus_rows[:, 0, :S][..., None]                     # [B, S, 1]
    return predicted, clusters


# ---------------------------------------------------------------------------
# Host-side pieces of HydrophobicAnalyzer.forward
# ---------------------------------------------------------------------------

def compute_true_hydrophobicity(sequences, scale=KYTE_DOOLITTLE):
    bsz = len(sequences)
    max_len = max(len(s) for s in sequences)
    out = np.zeros((bsz, max_len, 1), np.float32)
    for i, seq in enumerate(sequences):
        for j, aa in enumerate(seq):
            if aa in scale:
                out[i, j, 0] = scale[aa] / 5.0
    return jnp.asarray(out)


def identify_cluster_locations(clusters, threshold=0.5):
    clusters = np.asarray(clusters)
    bsz, seq_len, _ = clusters.shape
    locations = []
    for b in range(bsz):
        seq_clusters = []
        probs = clusters[b, :, 0]
        in_cluster, start = False, 0
        for i in range(seq_len):
            if probs[i] > threshold:
                if not in_cluster:
                    start, in_cluster = i, True
            elif in_cluster:
                seq_clusters.append((start, i))
                in_cluster = False
        if in_cluster:
            seq_clusters.append((start, seq_len))
        locations.append(seq_clusters)
    return locations


def hydrophobic_analyzer_forward(features, sequences, params, structures=None):
    predicted, clusters = hydrophobic_forward_core(features, params)
    results = {
        'predicted_hydrophobicity': predicted,
        'true_hydrophobicity': compute_true_hydrophobicity(sequences),
        'hydrophobic_clusters': clusters,
        'cluster_locations': identify_cluster_locations(clusters),
    }
    # TODO(synk): DBSCAN-based hydrophobic core analysis (structures != None)
    # intentionally not implemented (no Pallas equivalent of sklearn DBSCAN).
    return results


# ---------------------------------------------------------------------------
# Deterministic parameters + pure-JAX reference (for validation)
# ---------------------------------------------------------------------------

def init_params(key, feature_dim, hidden_dim):
    h2 = hidden_dim // 2
    ks = jax.random.split(key, 12)

    def unif(k, shape, fan_in):
        bound = 1.0 / np.sqrt(fan_in)
        return jax.random.uniform(k, shape, jnp.float32, -bound, bound)

    return {
        # encoder MLP (weights stored [in, out])
        'w1': unif(ks[0], (feature_dim, hidden_dim), feature_dim),
        'b1': unif(ks[1], (hidden_dim,), feature_dim),
        'gamma': jnp.ones((hidden_dim,), jnp.float32),
        'beta': jnp.zeros((hidden_dim,), jnp.float32),
        'w2': unif(ks[2], (hidden_dim, h2), hidden_dim),
        'b2': unif(ks[3], (h2,), hidden_dim),
        'w3': unif(ks[4], (h2, 1), h2),
        'b3': unif(ks[5], (1,), h2),
        # cluster detector convs, stored tap-first ([k, (in,) out])
        'cw1': unif(ks[6], (5, 16), 1 * 5),
        'cb1': unif(ks[7], (16,), 1 * 5),
        'cw2': unif(ks[8], (3, 16, 8), 16 * 3),
        'cb2': unif(ks[9], (8,), 16 * 3),
        'cw3': unif(ks[10], (3, 8), 8 * 3),
        'cb3': unif(ks[11], (1,), 8 * 3),
    }


def reference_forward(features, p, eps=BN_EPS):
    hi = jax.lax.Precision.HIGHEST
    B, S, F = features.shape
    x = features.reshape(-1, F)
    h1 = jnp.maximum(jnp.dot(x, p['w1'], precision=hi) + p['b1'], 0.0)
    mean = jnp.mean(h1, axis=0)
    var = jnp.mean((h1 - mean) ** 2, axis=0)
    h1n = (h1 - mean) * jax.lax.rsqrt(var + eps) * p['gamma'] + p['beta']
    h2 = jnp.maximum(jnp.dot(h1n, p['w2'], precision=hi) + p['b2'], 0.0)
    pred = jnp.tanh(jnp.dot(h2, p['w3'], precision=hi) + p['b3']).reshape(B, S, 1)

    def conv1d(x_bcs, w_tio, b_o, pad):
        k = w_tio.shape[0]
        s_len = x_bcs.shape[-1]
        xp = jnp.pad(x_bcs, ((0, 0), (0, 0), (pad, pad)))
        out = sum(jnp.einsum('bis,io->bos', xp[:, :, t:t + s_len], w_tio[t],
                             precision=hi) for t in range(k))
        return out + b_o[None, :, None]

    z = jnp.transpose(pred, (0, 2, 1))                              # [B,1,S]
    z = jnp.maximum(conv1d(z, p['cw1'][:, None, :], p['cb1'], 2), 0.0)
    z = jnp.maximum(conv1d(z, p['cw2'], p['cb2'], 1), 0.0)
    z = jax.nn.sigmoid(conv1d(z, p['cw3'][:, :, None], p['cb3'], 1))
    clusters = jnp.transpose(z, (0, 2, 1))                          # [B,S,1]
    return pred, clusters


if __name__ == "__main__":
    B, S, F, H = 2, 8, 32, 32

    key = jax.random.PRNGKey(0)
    k_feat, k_params = jax.random.split(key)
    features = jax.random.normal(k_feat, (B, S, F), jnp.float32)
    sequences = ["ACDEFGHI", "KLMNPQRS"]          # len == S

    params = init_params(k_params, F, H)

    results = hydrophobic_analyzer_forward(features, sequences, params)
    jax.block_until_ready(results['predicted_hydrophobicity'])
    jax.block_until_ready(results['hydrophobic_clusters'])

    assert results['predicted_hydrophobicity'].shape == (B, S, 1)
    assert results['hydrophobic_clusters'].shape == (B, S, 1)
    assert results['true_hydrophobicity'].shape == (B, S, 1)
    assert len(results['cluster_locations']) == B

    ref_pred, ref_clus = reference_forward(features, params)
    np.testing.assert_allclose(np.asarray(results['predicted_hydrophobicity']),
                               np.asarray(ref_pred), atol=2e-3, rtol=2e-3)
    np.testing.assert_allclose(np.asarray(results['hydrophobic_clusters']),
                               np.asarray(ref_clus), atol=2e-3, rtol=2e-3)

    print("KERNEL_OK")
</pallas_src>

<mosaic_0001>
module attributes {stable_mosaic.version = 11 : i64} {
  func.func @tail_kernel(%arg0: i32, %arg1: i32, %arg2: memref<1x32x128xf32, #tpu.memory_space<vmem>>, %arg3: memref<32x32xf32, #tpu.memory_space<vmem>>, %arg4: memref<32x1xf32, #tpu.memory_space<vmem>>, %arg5: memref<32x1xf32, #tpu.memory_space<vmem>>, %arg6: memref<32x1xf32, #tpu.memory_space<vmem>>, %arg7: memref<16x32xf32, #tpu.memory_space<vmem>>, %arg8: memref<16x1xf32, #tpu.memory_space<vmem>>, %arg9: memref<16x1xf32, #tpu.memory_space<vmem>>, %arg10: memref<1xf32, #tpu.memory_space<smem>>, %arg11: memref<1x1x128xf32, #tpu.memory_space<vmem>>) attributes {dimension_semantics = [#tpu.dimension_semantics<parallel>, #tpu.dimension_semantics<parallel>], iteration_bounds = array<i64: 2, 1>, scalar_prefetch = 0 : i64, scratch_operands = 0 : i64, tpu.core_type = #tpu.core_type<tc>, window_params = [{transform_indices = @transform_0, window_bounds = array<i64: 1, 32, 128>}, {pipeline_mode = #tpu.pipeline_mode<synchronous>, transform_indices = @transform_1, window_bounds = array<i64: 32, 32>}, {pipeline_mode = #tpu.pipeline_mode<synchronous>, transform_indices = @transform_2, window_bounds = array<i64: 32, 1>}, {pipeline_mode = #tpu.pipeline_mode<synchronous>, transform_indices = @transform_3, window_bounds = array<i64: 32, 1>}, {pipeline_mode = #tpu.pipeline_mode<synchronous>, transform_indices = @transform_4, window_bounds = array<i64: 32, 1>}, {pipeline_mode = #tpu.pipeline_mode<synchronous>, transform_indices = @transform_5, window_bounds = array<i64: 16, 32>}, {pipeline_mode = #tpu.pipeline_mode<synchronous>, transform_indices = @transform_6, window_bounds = array<i64: 16, 1>}, {pipeline_mode = #tpu.pipeline_mode<synchronous>, transform_indices = @transform_7, window_bounds = array<i64: 16, 1>}, {transform_indices = @transform_8, window_bounds = array<i64: 1>}, {transform_indices = @transform_9, window_bounds = array<i64: 1, 1, 128>}]} {
    %c0 = arith.constant 0 : index
    %c0_0 = arith.constant 0 : index
    %0 = vector.load %arg3[%c0, %c0_0] : memref<32x32xf32, #tpu.memory_space<vmem>>, vector<32x32xf32>
    %c0_1 = arith.constant 0 : index
    %c0_2 = arith.constant 0 : index
    %c0_3 = arith.constant 0 : index
    %1 = vector.load %arg2[%c0_1, %c0_2, %c0_3] : memref<1x32x128xf32, #tpu.memory_space<vmem>>, vector<1x32x128xf32>
    %2 = vector.shape_cast %1 : vector<1x32x128xf32> to vector<32x128xf32>
    %cst = arith.constant dense<0.000000e+00> : vector<32x128xf32>
    %3 = tpu.matmul %0, %2, %cst {dimension_numbers = #tpu.dot_dimension_numbers<[1], [0], [0], [1], [0, 0, 1, 1], [], []>} : vector<32x32xf32>, vector<32x128xf32>, vector<32x128xf32> -> vector<32x128xf32>
    %c0_4 = arith.constant 0 : index
    %c0_5 = arith.constant 0 : index
    %4 = vector.load %arg4[%c0_4, %c0_5] : memref<32x1xf32, #tpu.memory_space<vmem>>, vector<32x1xf32>
    %5 = vector.broadcast %4 : vector<32x1xf32> to vector<32x128xf32>
    %6 = arith.addf %3, %5 : vector<32x128xf32>
    %cst_6 = arith.constant 0.000000e+00 : f32
    %7 = vector.broadcast %cst_6 : f32 to vector<32x128xf32>
    %8 = arith.maximumf %6, %7 : vector<32x128xf32>
    %c0_7 = arith.constant 0 : index
    %c0_8 = arith.constant 0 : index
    %9 = vector.load %arg5[%c0_7, %c0_8] : memref<32x1xf32, #tpu.memory_space<vmem>>, vector<32x1xf32>
    %10 = vector.broadcast %9 : vector<32x1xf32> to vector<32x128xf32>
    %11 = arith.mulf %8, %10 : vector<32x128xf32>
    %c0_9 = arith.constant 0 : index
    %c0_10 = arith.constant 0 : index
    %12 = vector.load %arg6[%c0_9, %c0_10] : memref<32x1xf32, #tpu.memory_space<vmem>>, vector<32x1xf32>
    %13 = vector.broadcast %12 : vector<32x1xf32> to vector<32x128xf32>
    %14 = arith.addf %11, %13 : vector<32x128xf32>
    %c0_11 = arith.constant 0 : index
    %c0_12 = arith.constant 0 : index
    %15 = vector.load %arg7[%c0_11, %c0_12] : memref<16x32xf32, #tpu.memory_space<vmem>>, vector<16x32xf32>
    %cst_13 = arith.constant dense<0.000000e+00> : vector<16x128xf32>
    %16 = tpu.matmul %15, %14, %cst_13 {dimension_numbers = #tpu.dot_dimension_numbers<[1], [0], [0], [1], [0, 0, 1, 1], [], []>} : vector<16x32xf32>, vector<32x128xf32>, vector<16x128xf32> -> vector<16x128xf32>
    %c0_14 = arith.constant 0 : index
    %c0_15 = arith.constant 0 : index
    %17 = vector.load %arg8[%c0_14, %c0_15] : memref<16x1xf32, #tpu.memory_space<vmem>>, vector<16x1xf32>
    %18 = vector.broadcast %17 : vector<16x1xf32> to vector<16x128xf32>
    %19 = arith.addf %16, %18 : vector<16x128xf32>
    %cst_16 = arith.constant 0.000000e+00 : f32
    %20 = vector.broadcast %cst_16 : f32 to vector<16x128xf32>
    %21 = arith.maximumf %19, %20 : vector<16x128xf32>
    %c0_17 = arith.constant 0 : index
    %c0_18 = arith.constant 0 : index
    %22 = vector.load %arg9[%c0_17, %c0_18] : memref<16x1xf32, #tpu.memory_space<vmem>>, vector<16x1xf32>
    %23 = vector.broadcast %22 : vector<16x1xf32> to vector<16x128xf32>
    %24 = arith.mulf %21, %23 : vector<16x128xf32>
    %cst_19 = arith.constant dense<0.000000e+00> : vector<128xf32>
    %25 = vector.multi_reduction <add>, %24, %cst_19 [0] : vector<16x128xf32> to vector<128xf32>
    %26 = vector.shape_cast %25 : vector<128xf32> to vector<1x128xf32>
    %c0_20 = arith.constant 0 : index
    %27 = memref.load %arg10[%c0_20] : memref<1xf32, #tpu.memory_space<smem>>
    %28 = vector.broadcast %27 : f32 to vector<1x128xf32>
    %29 = arith.addf %26, %28 : vector<1x128xf32>
    %30 = math.tanh %29 : vector<1x128xf32>
    %c0_21 = arith.constant 0 : index
    %c0_22 = arith.constant 0 : index
    %c0_23 = arith.constant 0 : index
    %31 = vector.load %arg11[%c0_21, %c0_22, %c0_23] : memref<1x1x128xf32, #tpu.memory_space<vmem>>, vector<1x1x128xf32>
    %32 = vector.shape_cast %31 : vector<1x1x128xf32> to vector<1x128xf32>
    %33 = vector.shape_cast %30 : vector<1x128xf32> to vector<1x1x128xf32>
    tpu.vector_store %arg11[%c0_21, %c0_22, %c0_23], %33 {strides = array<i32>} : memref<1x1x128xf32, #tpu.memory_space<vmem>>, vector<1x1x128xf32>,
    return
  }
  func.func @transform_0(%arg0: i32, %arg1: i32) -> (i32, i32, i32) {
    %c0_i32 = arith.constant 0 : i32
    %c0_i32_0 = arith.constant 0 : i32
    return %arg0, %c0_i32, %arg1 : i32, i32, i32
  }
  func.func @transform_1(%arg0: i32, %arg1: i32) -> (i32, i32) {
    %c0_i32 = arith.constant 0 : i32
    %c0_i32_0 = arith.constant 0 : i32
    %c0_i32_1 = arith.constant 0 : i32
    return %c0_i32, %c0_i32_0 : i32, i32
  }
  func.func @transform_2(%arg0: i32, %arg1: i32) -> (i32, i32) {
    %c0_i32 = arith.constant 0 : i32
    %c0_i32_0 = arith.constant 0 : i32
    %c0_i32_1 = arith.constant 0 : i32
    return %c0_i32, %c0_i32_0 : i32, i32
  }
  func.func @transform_3(%arg0: i32, %arg1: i32) -> (i32, i32) {
    %c0_i32 = arith.constant 0 : i32
    %c0_i32_0 = arith.constant 0 : i32
    %c0_i32_1 = arith.constant 0 : i32
    return %c0_i32, %c0_i32_0 : i32, i32
  }
  func.func @transform_4(%arg0: i32, %arg1: i32) -> (i32, i32) {
    %c0_i32 = arith.constant 0 : i32
    %c0_i32_0 = arith.constant 0 : i32
    %c0_i32_1 = arith.constant 0 : i32
    return %c0_i32, %c0_i32_0 : i32, i32
  }
  func.func @transform_5(%arg0: i32, %arg1: i32) -> (i32, i32) {
    %c0_i32 = arith.constant 0 : i32
    %c0_i32_0 = arith.constant 0 : i32
    %c0_i32_1 = arith.constant 0 : i32
    return %c0_i32, %c0_i32_0 : i32, i32
  }
  func.func @transform_6(%arg0: i32, %arg1: i32) -> (i32, i32) {
    %c0_i32 = arith.constant 0 : i32
    %c0_i32_0 = arith.constant 0 : i32
    %c0_i32_1 = arith.constant 0 : i32
    return %c0_i32, %c0_i32_0 : i32, i32
  }
  func.func @transform_7(%arg0: i32, %arg1: i32) -> (i32, i32) {
    %c0_i32 = arith.constant 0 : i32
    %c0_i32_0 = arith.constant 0 : i32
    %c0_i32_1 = arith.constant 0 : i32
    return %c0_i32, %c0_i32_0 : i32, i32
  }
  func.func @transform_8(%arg0: i32, %arg1: i32) -> i32 {
    %c0_i32 = arith.constant 0 : i32
    %c0_i32_0 = arith.constant 0 : i32
    return %c0_i32 : i32
  }
  func.func @transform_9(%arg0: i32, %arg1: i32) -> (i32, i32, i32) {
    %c0_i32 = arith.constant 0 : i32
    %c0_i32_0 = arith.constant 0 : i32
    return %arg0, %c0_i32, %arg1 : i32, i32, i32
  }
}

module attributes {stable_mosaic.version = 11 : i64} {
  func.func @stats_kernel(%arg0: i32, %arg1: i32, %arg2: memref<1x32x128xf32, #tpu.memory_space<vmem>>, %arg3: memref<32x32xf32, #tpu.memory_space<vmem>>, %arg4: memref<32x1xf32, #tpu.memory_space<vmem>>, %arg5: memref<1x32x1xf32, #tpu.memory_space<vmem>>, %arg6: memref<1x32x1xf32, #tpu.memory_space<vmem>>) attributes {dimension_semantics = [#tpu.dimension_semantics<parallel>, #tpu.dimension_semantics<parallel>], iteration_bounds = array<i64: 2, 1>, scalar_prefetch = 0 : i64, scratch_operands = 0 : i64, tpu.core_type = #tpu.core_type<tc>, window_params = [{transform_indices = @transform_0, window_bounds = array<i64: 1, 32, 128>}, {pipeline_mode = #tpu.pipeline_mode<synchronous>, transform_indices = @transform_1, window_bounds = array<i64: 32, 32>}, {pipeline_mode = #tpu.pipeline_mode<synchronous>, transform_indices = @transform_2, window_bounds = array<i64: 32, 1>}, {transform_indices = @transform_3, window_bounds = array<i64: 1, 32, 1>}, {transform_indices = @transform_4, window_bounds = array<i64: 1, 32, 1>}]} {
    %c0 = arith.constant 0 : index
    %c0_0 = arith.constant 0 : index
    %0 = vector.load %arg3[%c0, %c0_0] : memref<32x32xf32, #tpu.memory_space<vmem>>, vector<32x32xf32>
    %c0_1 = arith.constant 0 : index
    %c0_2 = arith.constant 0 : index
    %c0_3 = arith.constant 0 : index
    %1 = vector.load %arg2[%c0_1, %c0_2, %c0_3] : memref<1x32x128xf32, #tpu.memory_space<vmem>>, vector<1x32x128xf32>
    %2 = vector.shape_cast %1 : vector<1x32x128xf32> to vector<32x128xf32>
    %cst = arith.constant dense<0.000000e+00> : vector<32x128xf32>
    %3 = tpu.matmul %0, %2, %cst {dimension_numbers = #tpu.dot_dimension_numbers<[1], [0], [0], [1], [0, 0, 1, 1], [], []>} : vector<32x32xf32>, vector<32x128xf32>, vector<32x128xf32> -> vector<32x128xf32>
    %c0_4 = arith.constant 0 : index
    %c0_5 = arith.constant 0 : index
    %4 = vector.load %arg4[%c0_4, %c0_5] : memref<32x1xf32, #tpu.memory_space<vmem>>, vector<32x1xf32>
    %5 = vector.broadcast %4 : vector<32x1xf32> to vector<32x128xf32>
    %6 = arith.addf %3, %5 : vector<32x128xf32>
    %cst_6 = arith.constant 0.000000e+00 : f32
    %7 = vector.broadcast %cst_6 : f32 to vector<32x128xf32>
    %8 = arith.maximumf %6, %7 : vector<32x128xf32>
    %c0_i32 = arith.constant 0 : i32
    %9 = arith.cmpi ne, %arg1, %c0_i32 : i32
    %10 = arith.extui %9 : i1 to i32
    %c0_i32_7 = arith.constant 0 : i32
    %11 = arith.cmpi ne, %10, %c0_i32_7 : i32
    scf.if %11 {
      %cst_10 = arith.constant dense<0.000000e+00> : vector<32xf32>
      %15 = vector.multi_reduction <add>, %8, %cst_10 [1] : vector<32x128xf32> to vector<32xf32>
      %16 = vector.shape_cast %15 : vector<32xf32> to vector<32x1xf32>
      %c0_11 = arith.constant 0 : index
      %c0_12 = arith.constant 0 : index
      %c0_13 = arith.constant 0 : index
      %17 = vector.load %arg5[%c0_11, %c0_12, %c0_13] : memref<1x32x1xf32, #tpu.memory_space<vmem>>, vector<1x32x1xf32>
      %18 = vector.shape_cast %17 : vector<1x32x1xf32> to vector<32x1xf32>
      %19 = vector.shape_cast %16 : vector<32x1xf32> to vector<1x32x1xf32>
      tpu.vector_store %arg5[%c0_11, %c0_12, %c0_13], %19 {strides = array<i32>} : memref<1x32x1xf32, #tpu.memory_space<vmem>>, vector<1x32x1xf32>,
      %20 = arith.mulf %8, %8 : vector<32x128xf32>
      %cst_14 = arith.constant dense<0.000000e+00> : vector<32xf32>
      %21 = vector.multi_reduction <add>, %20, %cst_14 [1] : vector<32x128xf32> to vector<32xf32>
      %22 = vector.shape_cast %21 : vector<32xf32> to vector<32x1xf32>
      %c0_15 = arith.constant 0 : index
      %c0_16 = arith.constant 0 : index
      %c0_17 = arith.constant 0 : index
      %23 = vector.load %arg6[%c0_15, %c0_16, %c0_17] : memref<1x32x1xf32, #tpu.memory_space<vmem>>, vector<1x32x1xf32>
      %24 = vector.shape_cast %23 : vector<1x32x1xf32> to vector<32x1xf32>
      %25 = vector.shape_cast %22 : vector<32x1xf32> to vector<1x32x1xf32>
      tpu.vector_store %arg6[%c0_15, %c0_16, %c0_17], %25 {strides = array<i32>} : memref<1x32x1xf32, #tpu.memory_space<vmem>>, vector<1x32x1xf32>,
    } else {
    }
    %c0_i32_8 = arith.constant 0 : i32
    %12 = arith.cmpi eq, %arg1, %c0_i32_8 : i32
    %13 = arith.extui %12 : i1 to i32
    %c0_i32_9 = arith.constant 0 : i32
    %14 = arith.cmpi ne, %13, %c0_i32_9 : i32
    scf.if %14 {
      %15 = tpu.iota {dimensions = array<i32: 1>} : vector<1x128xi32>
      %c128_i32 = arith.constant 128 : i32
      %16 = arith.muli %arg1, %c128_i32 : i32
      %17 = vector.broadcast %16 : i32 to vector<1x128xi32>
      %18 = arith.addi %15, %17 : vector<1x128xi32>
      %c8_i32 = arith.constant 8 : i32
      %19 = vector.broadcast %c8_i32 : i32 to vector<1x128xi32>
      %20 = arith.cmpi slt, %18, %19 : vector<1x128xi32>
      %cst_10 = arith.constant 0.000000e+00 : f32
      %21 = vector.shape_cast %20 : vector<1x128xi1> to vector<1x128xi1>
      %22 = vector.broadcast %21 : vector<1x128xi1> to vector<32x128xi1>
      %23 = vector.broadcast %cst_10 : f32 to vector<32x128xf32>
      %24 = arith.select %22, %8, %23 : vector<32x128xi1>, vector<32x128xf32>
      %cst_11 = arith.constant dense<0.000000e+00> : vector<32xf32>
      %25 = vector.multi_reduction <add>, %24, %cst_11 [1] : vector<32x128xf32> to vector<32xf32>
      %26 = vector.shape_cast %25 : vector<32xf32> to vector<32x1xf32>
      %c0_12 = arith.constant 0 : index
      %c0_13 = arith.constant 0 : index
      %c0_14 = arith.constant 0 : index
      %27 = vector.load %arg5[%c0_12, %c0_13, %c0_14] : memref<1x32x1xf32, #tpu.memory_space<vmem>>, vector<1x32x1xf32>
      %28 = vector.shape_cast %27 : vector<1x32x1xf32> to vector<32x1xf32>
      %29 = vector.shape_cast %26 : vector<32x1xf32> to vector<1x32x1xf32>
      tpu.vector_store %arg5[%c0_12, %c0_13, %c0_14], %29 {strides = array<i32>} : memref<1x32x1xf32, #tpu.memory_space<vmem>>, vector<1x32x1xf32>,
      %30 = arith.mulf %24, %24 : vector<32x128xf32>
      %cst_15 = arith.constant dense<0.000000e+00> : vector<32xf32>
      %31 = vector.multi_reduction <add>, %30, %cst_15 [1] : vector<32x128xf32> to vector<32xf32>
      %32 = vector.shape_cast %31 : vector<32xf32> to vector<32x1xf32>
      %c0_16 = arith.constant 0 : index
      %c0_17 = arith.constant 0 : index
      %c0_18 = arith.constant 0 : index
      %33 = vector.load %arg6[%c0_16, %c0_17, %c0_18] : memref<1x32x1xf32, #tpu.memory_space<vmem>>, vector<1x32x1xf32>
      %34 = vector.shape_cast %33 : vector<1x32x1xf32> to vector<32x1xf32>
      %35 = vector.shape_cast %32 : vector<32x1xf32> to vector<1x32x1xf32>
      tpu.vector_store %arg6[%c0_16, %c0_17, %c0_18], %35 {strides = array<i32>} : memref<1x32x1xf32, #tpu.memory_space<vmem>>, vector<1x32x1xf32>,
    } else {
    }
    return
  }
  func.func @transform_0(%arg0: i32, %arg1: i32) -> (i32, i32, i32) {
    %c0_i32 = arith.constant 0 : i32
    %c0_i32_0 = arith.constant 0 : i32
    return %arg0, %c0_i32, %arg1 : i32, i32, i32
  }
  func.func @transform_1(%arg0: i32, %arg1: i32) -> (i32, i32) {
    %c0_i32 = arith.constant 0 : i32
    %c0_i32_0 = arith.constant 0 : i32
    %c0_i32_1 = arith.constant 0 : i32
    return %c0_i32, %c0_i32_0 : i32, i32
  }
  func.func @transform_2(%arg0: i32, %arg1: i32) -> (i32, i32) {
    %c0_i32 = arith.constant 0 : i32
    %c0_i32_0 = arith.constant 0 : i32
    %c0_i32_1 = arith.constant 0 : i32
    return %c0_i32, %c0_i32_0 : i32, i32
  }
  func.func @transform_3(%arg0: i32, %arg1: i32) -> (i32, i32, i32) {
    %c1_i32 = arith.constant 1 : i32
    %0 = arith.muli %arg0, %c1_i32 : i32
    %1 = arith.addi %0, %arg1 : i32
    %c0_i32 = arith.constant 0 : i32
    %c0_i32_0 = arith.constant 0 : i32
    %c0_i32_1 = arith.constant 0 : i32
    return %1, %c0_i32, %c0_i32_0 : i32, i32, i32
  }
  func.func @transform_4(%arg0: i32, %arg1: i32) -> (i32, i32, i32) {
    %c1_i32 = arith.constant 1 : i32
    %0 = arith.muli %arg0, %c1_i32 : i32
    %1 = arith.addi %0, %arg1 : i32
    %c0_i32 = arith.constant 0 : i32
    %c0_i32_0 = arith.constant 0 : i32
    %c0_i32_1 = arith.constant 0 : i32
    return %1, %c0_i32, %c0_i32_0 : i32, i32, i32
  }
}

module attributes {stable_mosaic.version = 11 : i64} {
  func.func @cluster_kernel(%arg0: i32, %arg1: memref<1x1x128xf32, #tpu.memory_space<vmem>>, %arg2: memref<16x5xf32, #tpu.memory_space<vmem>>, %arg3: memref<16x1xf32, #tpu.memory_space<vmem>>, %arg4: memref<3x8x16xf32, #tpu.memory_space<vmem>>, %arg5: memref<8x1xf32, #tpu.memory_space<vmem>>, %arg6: memref<8x3xf32, #tpu.memory_space<vmem>>, %arg7: memref<1xf32, #tpu.memory_space<smem>>, %arg8: memref<1x1x128xf32, #tpu.memory_space<vmem>>) attributes {dimension_semantics = [#tpu.dimension_semantics<parallel>], iteration_bounds = array<i64: 2>, scalar_prefetch = 0 : i64, scratch_operands = 0 : i64, tpu.core_type = #tpu.core_type<tc>, window_params = [{transform_indices = @transform_0, window_bounds = array<i64: 1, 1, 128>}, {pipeline_mode = #tpu.pipeline_mode<synchronous>, transform_indices = @transform_1, window_bounds = array<i64: 16, 5>}, {pipeline_mode = #tpu.pipeline_mode<synchronous>, transform_indices = @transform_2, window_bounds = array<i64: 16, 1>}, {pipeline_mode = #tpu.pipeline_mode<synchronous>, transform_indices = @transform_3, window_bounds = array<i64: 3, 8, 16>}, {pipeline_mode = #tpu.pipeline_mode<synchronous>, transform_indices = @transform_4, window_bounds = array<i64: 8, 1>}, {pipeline_mode = #tpu.pipeline_mode<synchronous>, transform_indices = @transform_5, window_bounds = array<i64: 8, 3>}, {transform_indices = @transform_6, window_bounds = array<i64: 1>}, {transform_indices = @transform_7, window_bounds = array<i64: 1, 1, 128>}]} {
    %c0 = arith.constant 0 : index
    %c0_0 = arith.constant 0 : index
    %c0_1 = arith.constant 0 : index
    %0 = vector.load %arg1[%c0, %c0_0, %c0_1] : memref<1x1x128xf32, #tpu.memory_space<vmem>>, vector<1x1x128xf32>
    %1 = vector.shape_cast %0 : vector<1x1x128xf32> to vector<1x128xf32>
    %2 = tpu.iota {dimensions = array<i32: 1>} : vector<1x128xi32>
    %c-2_i32 = arith.constant -2 : i32
    %3 = vector.broadcast %c-2_i32 : i32 to vector<1x128xi32>
    %4 = arith.addi %2, %3 : vector<1x128xi32>
    %c0_i32 = arith.constant 0 : i32
    %5 = vector.broadcast %c0_i32 : i32 to vector<1x128xi32>
    %6 = arith.cmpi sge, %4, %5 : vector<1x128xi32>
    %c-2_i32_2 = arith.constant -2 : i32
    %7 = vector.broadcast %c-2_i32_2 : i32 to vector<1x128xi32>
    %8 = arith.addi %2, %7 : vector<1x128xi32>
    %c8_i32 = arith.constant 8 : i32
    %9 = vector.broadcast %c8_i32 : i32 to vector<1x128xi32>
    %10 = arith.cmpi slt, %8, %9 : vector<1x128xi32>
    %11 = arith.andi %6, %10 : vector<1x128xi1>
    %c-1_i32 = arith.constant -1 : i32
    %12 = vector.broadcast %c-1_i32 : i32 to vector<1x128xi32>
    %13 = arith.addi %2, %12 : vector<1x128xi32>
    %c0_i32_3 = arith.constant 0 : i32
    %14 = vector.broadcast %c0_i32_3 : i32 to vector<1x128xi32>
    %15 = arith.cmpi sge, %13, %14 : vector<1x128xi32>
    %c-1_i32_4 = arith.constant -1 : i32
    %16 = vector.broadcast %c-1_i32_4 : i32 to vector<1x128xi32>
    %17 = arith.addi %2, %16 : vector<1x128xi32>
    %c8_i32_5 = arith.constant 8 : i32
    %18 = vector.broadcast %c8_i32_5 : i32 to vector<1x128xi32>
    %19 = arith.cmpi slt, %17, %18 : vector<1x128xi32>
    %20 = arith.andi %15, %19 : vector<1x128xi1>
    %c0_i32_6 = arith.constant 0 : i32
    %21 = vector.broadcast %c0_i32_6 : i32 to vector<1x128xi32>
    %22 = arith.addi %2, %21 : vector<1x128xi32>
    %c0_i32_7 = arith.constant 0 : i32
    %23 = vector.broadcast %c0_i32_7 : i32 to vector<1x128xi32>
    %24 = arith.cmpi sge, %22, %23 : vector<1x128xi32>
    %c0_i32_8 = arith.constant 0 : i32
    %25 = vector.broadcast %c0_i32_8 : i32 to vector<1x128xi32>
    %26 = arith.addi %2, %25 : vector<1x128xi32>
    %c8_i32_9 = arith.constant 8 : i32
    %27 = vector.broadcast %c8_i32_9 : i32 to vector<1x128xi32>
    %28 = arith.cmpi slt, %26, %27 : vector<1x128xi32>
    %29 = arith.andi %24, %28 : vector<1x128xi1>
    %c1_i32 = arith.constant 1 : i32
    %30 = vector.broadcast %c1_i32 : i32 to vector<1x128xi32>
    %31 = arith.addi %2, %30 : vector<1x128xi32>
    %c0_i32_10 = arith.constant 0 : i32
    %32 = vector.broadcast %c0_i32_10 : i32 to vector<1x128xi32>
    %33 = arith.cmpi sge, %31, %32 : vector<1x128xi32>
    %c1_i32_11 = arith.constant 1 : i32
    %34 = vector.broadcast %c1_i32_11 : i32 to vector<1x128xi32>
    %35 = arith.addi %2, %34 : vector<1x128xi32>
    %c8_i32_12 = arith.constant 8 : i32
    %36 = vector.broadcast %c8_i32_12 : i32 to vector<1x128xi32>
    %37 = arith.cmpi slt, %35, %36 : vector<1x128xi32>
    %38 = arith.andi %33, %37 : vector<1x128xi1>
    %c2_i32 = arith.constant 2 : i32
    %39 = vector.broadcast %c2_i32 : i32 to vector<1x128xi32>
    %40 = arith.addi %2, %39 : vector<1x128xi32>
    %c0_i32_13 = arith.constant 0 : i32
    %41 = vector.broadcast %c0_i32_13 : i32 to vector<1x128xi32>
    %42 = arith.cmpi sge, %40, %41 : vector<1x128xi32>
    %c2_i32_14 = arith.constant 2 : i32
    %43 = vector.broadcast %c2_i32_14 : i32 to vector<1x128xi32>
    %44 = arith.addi %2, %43 : vector<1x128xi32>
    %c8_i32_15 = arith.constant 8 : i32
    %45 = vector.broadcast %c8_i32_15 : i32 to vector<1x128xi32>
    %46 = arith.cmpi slt, %44, %45 : vector<1x128xi32>
    %47 = arith.andi %42, %46 : vector<1x128xi1>
    %c0_16 = arith.constant 0 : index
    %c0_17 = arith.constant 0 : index
    %48 = vector.load %arg2[%c0_16, %c0_17] : memref<16x5xf32, #tpu.memory_space<vmem>>, vector<16x5xf32>
    %c0_18 = arith.constant 0 : index
    %c0_19 = arith.constant 0 : index
    %c0_20 = arith.constant 0 : index
    %49 = vector.load %arg4[%c0_18, %c0_19, %c0_20] : memref<3x8x16xf32, #tpu.memory_space<vmem>>, vector<3x8x16xf32>
    %c0_21 = arith.constant 0 : index
    %c0_22 = arith.constant 0 : index
    %50 = vector.load %arg6[%c0_21, %c0_22] : memref<8x3xf32, #tpu.memory_space<vmem>>, vector<8x3xf32>
    %cst = arith.constant 0.000000e+00 : f32
    %51 = vector.broadcast %cst : f32 to vector<16x128xf32>
    %52 = vector.extract_strided_slice %48 {offsets = [0, 0], sizes = [16, 1], strides = [1, 1]} : vector<16x5xf32> to vector<16x1xf32>
    %c2_i32_23 = arith.constant 2 : i32
    %53 = tpu.dynamic_rotate %1 by %c2_i32_23 dim 1 : vector<1x128xf32>, i32 -> vector<1x128xf32>
    %cst_24 = arith.constant 0.000000e+00 : f32
    %54 = vector.broadcast %cst_24 : f32 to vector<1x128xf32>
    %55 = arith.select %11, %53, %54 : vector<1x128xi1>, vector<1x128xf32>
    %56 = vector.broadcast %52 : vector<16x1xf32> to vector<16x128xf32>
    %57 = vector.broadcast %55 : vector<1x128xf32> to vector<16x128xf32>
    %58 = arith.mulf %56, %57 : vector<16x128xf32>
    %59 = arith.addf %51, %58 : vector<16x128xf32>
    %60 = vector.extract_strided_slice %48 {offsets = [0, 1], sizes = [16, 1], strides = [1, 1]} : vector<16x5xf32> to vector<16x1xf32>
    %c1_i32_25 = arith.constant 1 : i32
    %61 = tpu.dynamic_rotate %1 by %c1_i32_25 dim 1 : vector<1x128xf32>, i32 -> vector<1x128xf32>
    %cst_26 = arith.constant 0.000000e+00 : f32
    %62 = vector.broadcast %cst_26 : f32 to vector<1x128xf32>
    %63 = arith.select %20, %61, %62 : vector<1x128xi1>, vector<1x128xf32>
    %64 = vector.broadcast %60 : vector<16x1xf32> to vector<16x128xf32>
    %65 = vector.broadcast %63 : vector<1x128xf32> to vector<16x128xf32>
    %66 = arith.mulf %64, %65 : vector<16x128xf32>
    %67 = arith.addf %59, %66 : vector<16x128xf32>
    %68 = vector.extract_strided_slice %48 {offsets = [0, 2], sizes = [16, 1], strides = [1, 1]} : vector<16x5xf32> to vector<16x1xf32>
    %cst_27 = arith.constant 0.000000e+00 : f32
    %69 = vector.broadcast %cst_27 : f32 to vector<1x128xf32>
    %70 = arith.select %29, %1, %69 : vector<1x128xi1>, vector<1x128xf32>
    %71 = vector.broadcast %68 : vector<16x1xf32> to vector<16x128xf32>
    %72 = vector.broadcast %70 : vector<1x128xf32> to vector<16x128xf32>
    %73 = arith.mulf %71, %72 : vector<16x128xf32>
    %74 = arith.addf %67, %73 : vector<16x128xf32>
    %75 = vector.extract_strided_slice %48 {offsets = [0, 3], sizes = [16, 1], strides = [1, 1]} : vector<16x5xf32> to vector<16x1xf32>
    %c127_i32 = arith.constant 127 : i32
    %76 = tpu.dynamic_rotate %1 by %c127_i32 dim 1 : vector<1x128xf32>, i32 -> vector<1x128xf32>
    %cst_28 = arith.constant 0.000000e+00 : f32
    %77 = vector.broadcast %cst_28 : f32 to vector<1x128xf32>
    %78 = arith.select %38, %76, %77 : vector<1x128xi1>, vector<1x128xf32>
    %79 = vector.broadcast %75 : vector<16x1xf32> to vector<16x128xf32>
    %80 = vector.broadcast %78 : vector<1x128xf32> to vector<16x128xf32>
    %81 = arith.mulf %79, %80 : vector<16x128xf32>
    %82 = arith.addf %74, %81 : vector<16x128xf32>
    %83 = vector.extract_strided_slice %48 {offsets = [0, 4], sizes = [16, 1], strides = [1, 1]} : vector<16x5xf32> to vector<16x1xf32>
    %c126_i32 = arith.constant 126 : i32
    %84 = tpu.dynamic_rotate %1 by %c126_i32 dim 1 : vector<1x128xf32>, i32 -> vector<1x128xf32>
    %cst_29 = arith.constant 0.000000e+00 : f32
    %85 = vector.broadcast %cst_29 : f32 to vector<1x128xf32>
    %86 = arith.select %47, %84, %85 : vector<1x128xi1>, vector<1x128xf32>
    %87 = vector.broadcast %83 : vector<16x1xf32> to vector<16x128xf32>
    %88 = vector.broadcast %86 : vector<1x128xf32> to vector<16x128xf32>
    %89 = arith.mulf %87, %88 : vector<16x128xf32>
    %90 = arith.addf %82, %89 : vector<16x128xf32>
    %c0_30 = arith.constant 0 : index
    %c0_31 = arith.constant 0 : index
    %91 = vector.load %arg3[%c0_30, %c0_31] : memref<16x1xf32, #tpu.memory_space<vmem>>, vector<16x1xf32>
    %92 = vector.broadcast %91 : vector<16x1xf32> to vector<16x128xf32>
    %93 = arith.addf %90, %92 : vector<16x128xf32>
    %cst_32 = arith.constant 0.000000e+00 : f32
    %94 = vector.broadcast %cst_32 : f32 to vector<16x128xf32>
    %95 = arith.maximumf %93, %94 : vector<16x128xf32>
    %cst_33 = arith.constant 0.000000e+00 : f32
    %96 = vector.broadcast %cst_33 : f32 to vector<8x128xf32>
    %97 = vector.extract_strided_slice %49 {offsets = [0, 0, 0], sizes = [1, 8, 16], strides = [1, 1, 1]} : vector<3x8x16xf32> to vector<1x8x16xf32>
    %98 = vector.shape_cast %97 : vector<1x8x16xf32> to vector<8x16xf32>
    %c1_i32_34 = arith.constant 1 : i32
    %99 = tpu.dynamic_rotate %95 by %c1_i32_34 dim 1 : vector<16x128xf32>, i32 -> vector<16x128xf32>
    %cst_35 = arith.constant 0.000000e+00 : f32
    %100 = vector.shape_cast %20 : vector<1x128xi1> to vector<1x128xi1>
    %101 = vector.broadcast %100 : vector<1x128xi1> to vector<16x128xi1>
    %102 = vector.broadcast %cst_35 : f32 to vector<16x128xf32>
    %103 = arith.select %101, %99, %102 : vector<16x128xi1>, vector<16x128xf32>
    %cst_36 = arith.constant dense<0.000000e+00> : vector<8x128xf32>
    %104 = tpu.matmul %98, %103, %cst_36 {dimension_numbers = #tpu.dot_dimension_numbers<[1], [0], [0], [1], [0, 0, 1, 1], [], []>} : vector<8x16xf32>, vector<16x128xf32>, vector<8x128xf32> -> vector<8x128xf32>
    %105 = arith.addf %96, %104 : vector<8x128xf32>
    %106 = vector.extract_strided_slice %49 {offsets = [1, 0, 0], sizes = [1, 8, 16], strides = [1, 1, 1]} : vector<3x8x16xf32> to vector<1x8x16xf32>
    %107 = vector.shape_cast %106 : vector<1x8x16xf32> to vector<8x16xf32>
    %cst_37 = arith.constant 0.000000e+00 : f32
    %108 = vector.shape_cast %29 : vector<1x128xi1> to vector<1x128xi1>
    %109 = vector.broadcast %108 : vector<1x128xi1> to vector<16x128xi1>
    %110 = vector.broadcast %cst_37 : f32 to vector<16x128xf32>
    %111 = arith.select %109, %95, %110 : vector<16x128xi1>, vector<16x128xf32>
    %cst_38 = arith.constant dense<0.000000e+00> : vector<8x128xf32>
    %112 = tpu.matmul %107, %111, %cst_38 {dimension_numbers = #tpu.dot_dimension_numbers<[1], [0], [0], [1], [0, 0, 1, 1], [], []>} : vector<8x16xf32>, vector<16x128xf32>, vector<8x128xf32> -> vector<8x128xf32>
    %113 = arith.addf %105, %112 : vector<8x128xf32>
    %114 = vector.extract_strided_slice %49 {offsets = [2, 0, 0], sizes = [1, 8, 16], strides = [1, 1, 1]} : vector<3x8x16xf32> to vector<1x8x16xf32>
    %115 = vector.shape_cast %114 : vector<1x8x16xf32> to vector<8x16xf32>
    %c127_i32_39 = arith.constant 127 : i32
    %116 = tpu.dynamic_rotate %95 by %c127_i32_39 dim 1 : vector<16x128xf32>, i32 -> vector<16x128xf32>
    %cst_40 = arith.constant 0.000000e+00 : f32
    %117 = vector.shape_cast %38 : vector<1x128xi1> to vector<1x128xi1>
    %118 = vector.broadcast %117 : vector<1x128xi1> to vector<16x128xi1>
    %119 = vector.broadcast %cst_40 : f32 to vector<16x128xf32>
    %120 = arith.select %118, %116, %119 : vector<16x128xi1>, vector<16x128xf32>
    %cst_41 = arith.constant dense<0.000000e+00> : vector<8x128xf32>
    %121 = tpu.matmul %115, %120, %cst_41 {dimension_numbers = #tpu.dot_dimension_numbers<[1], [0], [0], [1], [0, 0, 1, 1], [], []>} : vector<8x16xf32>, vector<16x128xf32>, vector<8x128xf32> -> vector<8x128xf32>
    %122 = arith.addf %113, %121 : vector<8x128xf32>
    %c0_42 = arith.constant 0 : index
    %c0_43 = arith.constant 0 : index
    %123 = vector.load %arg5[%c0_42, %c0_43] : memref<8x1xf32, #tpu.memory_space<vmem>>, vector<8x1xf32>
    %124 = vector.broadcast %123 : vector<8x1xf32> to vector<8x128xf32>
    %125 = arith.addf %122, %124 : vector<8x128xf32>
    %cst_44 = arith.constant 0.000000e+00 : f32
    %126 = vector.broadcast %cst_44 : f32 to vector<8x128xf32>
    %127 = arith.maximumf %125, %126 : vector<8x128xf32>
    %cst_45 = arith.constant 0.000000e+00 : f32
    %128 = vector.broadcast %cst_45 : f32 to vector<1x128xf32>
    %c1_i32_46 = arith.constant 1 : i32
    %129 = tpu.dynamic_rotate %127 by %c1_i32_46 dim 1 : vector<8x128xf32>, i32 -> vector<8x128xf32>
    %cst_47 = arith.constant 0.000000e+00 : f32
    %130 = vector.shape_cast %20 : vector<1x128xi1> to vector<1x128xi1>
    %131 = vector.broadcast %130 : vector<1x128xi1> to vector<8x128xi1>
    %132 = vector.broadcast %cst_47 : f32 to vector<8x128xf32>
    %133 = arith.select %131, %129, %132 : vector<8x128xi1>, vector<8x128xf32>
    %134 = vector.extract_strided_slice %50 {offsets = [0, 0], sizes = [8, 1], strides = [1, 1]} : vector<8x3xf32> to vector<8x1xf32>
    %135 = vector.broadcast %134 : vector<8x1xf32> to vector<8x128xf32>
    %136 = arith.mulf %133, %135 : vector<8x128xf32>
    %cst_48 = arith.constant dense<0.000000e+00> : vector<128xf32>
    %137 = vector.multi_reduction <add>, %136, %cst_48 [0] : vector<8x128xf32> to vector<128xf32>
    %138 = vector.shape_cast %137 : vector<128xf32> to vector<1x128xf32>
    %139 = arith.addf %128, %138 : vector<1x128xf32>
    %cst_49 = arith.constant 0.000000e+00 : f32
    %140 = vector.shape_cast %29 : vector<1x128xi1> to vector<1x128xi1>
    %141 = vector.broadcast %140 : vector<1x128xi1> to vector<8x128xi1>
    %142 = vector.broadcast %cst_49 : f32 to vector<8x128xf32>
    %143 = arith.select %141, %127, %142 : vector<8x128xi1>, vector<8x128xf32>
    %144 = vector.extract_strided_slice %50 {offsets = [0, 1], sizes = [8, 1], strides = [1, 1]} : vector<8x3xf32> to vector<8x1xf32>
    %145 = vector.broadcast %144 : vector<8x1xf32> to vector<8x128xf32>
    %146 = arith.mulf %143, %145 : vector<8x128xf32>
    %cst_50 = arith.constant dense<0.000000e+00> : vector<128xf32>
    %147 = vector.multi_reduction <add>, %146, %cst_50 [0] : vector<8x128xf32> to vector<128xf32>
    %148 = vector.shape_cast %147 : vector<128xf32> to vector<1x128xf32>
    %149 = arith.addf %139, %148 : vector<1x128xf32>
    %c127_i32_51 = arith.constant 127 : i32
    %150 = tpu.dynamic_rotate %127 by %c127_i32_51 dim 1 : vector<8x128xf32>, i32 -> vector<8x128xf32>
    %cst_52 = arith.constant 0.000000e+00 : f32
    %151 = vector.shape_cast %38 : vector<1x128xi1> to vector<1x128xi1>
    %152 = vector.broadcast %151 : vector<1x128xi1> to vector<8x128xi1>
    %153 = vector.broadcast %cst_52 : f32 to vector<8x128xf32>
    %154 = arith.select %152, %150, %153 : vector<8x128xi1>, vector<8x128xf32>
    %155 = vector.extract_strided_slice %50 {offsets = [0, 2], sizes = [8, 1], strides = [1, 1]} : vector<8x3xf32> to vector<8x1xf32>
    %156 = vector.broadcast %155 : vector<8x1xf32> to vector<8x128xf32>
    %157 = arith.mulf %154, %156 : vector<8x128xf32>
    %cst_53 = arith.constant dense<0.000000e+00> : vector<128xf32>
    %158 = vector.multi_reduction <add>, %157, %cst_53 [0] : vector<8x128xf32> to vector<128xf32>
    %159 = vector.shape_cast %158 : vector<128xf32> to vector<1x128xf32>
    %160 = arith.addf %149, %159 : vector<1x128xf32>
    %c0_54 = arith.constant 0 : index
    %161 = memref.load %arg7[%c0_54] : memref<1xf32, #tpu.memory_space<smem>>
    %162 = vector.broadcast %161 : f32 to vector<1x128xf32>
    %163 = arith.addf %160, %162 : vector<1x128xf32>
    %164 = arith.negf %163 : vector<1x128xf32>
    %165 = math.exp %164 : vector<1x128xf32>
    %cst_55 = arith.constant 1.000000e+00 : f32
    %166 = vector.broadcast %cst_55 : f32 to vector<1x128xf32>
    %167 = arith.addf %166, %165 : vector<1x128xf32>
    %168 = arith.divf %166, %167 : vector<1x128xf32>
    %c0_56 = arith.constant 0 : index
    %c0_57 = arith.constant 0 : index
    %c0_58 = arith.constant 0 : index
    %169 = vector.load %arg8[%c0_56, %c0_57, %c0_58] : memref<1x1x128xf32, #tpu.memory_space<vmem>>, vector<1x1x128xf32>
    %170 = vector.shape_cast %169 : vector<1x1x128xf32> to vector<1x128xf32>
    %171 = vector.shape_cast %168 : vector<1x128xf32> to vector<1x1x128xf32>
    tpu.vector_store %arg8[%c0_56, %c0_57, %c0_58], %171 {strides = array<i32>} : memref<1x1x128xf32, #tpu.memory_space<vmem>>, vector<1x1x128xf32>,
    return
  }
  func.func @transform_0(%arg0: i32) -> (i32, i32, i32) {
    %c0_i32 = arith.constant 0 : i32
    %c0_i32_0 = arith.constant 0 : i32
    %c0_i32_1 = arith.constant 0 : i32
    return %arg0, %c0_i32, %c0_i32_0 : i32, i32, i32
  }
  func.func @transform_1(%arg0: i32) -> (i32, i32) {
    %c0_i32 = arith.constant 0 : i32
    %c0_i32_0 = arith.constant 0 : i32
    %c0_i32_1 = arith.constant 0 : i32
    return %c0_i32, %c0_i32_0 : i32, i32
  }
  func.func @transform_2(%arg0: i32) -> (i32, i32) {
    %c0_i32 = arith.constant 0 : i32
    %c0_i32_0 = arith.constant 0 : i32
    %c0_i32_1 = arith.constant 0 : i32
    return %c0_i32, %c0_i32_0 : i32, i32
  }
  func.func @transform_3(%arg0: i32) -> (i32, i32, i32) {
    %c0_i32 = arith.constant 0 : i32
    %c0_i32_0 = arith.constant 0 : i32
    %c0_i32_1 = arith.constant 0 : i32
    %c0_i32_2 = arith.constant 0 : i32
    return %c0_i32, %c0_i32_0, %c0_i32_1 : i32, i32, i32
  }
  func.func @transform_4(%arg0: i32) -> (i32, i32) {
    %c0_i32 = arith.constant 0 : i32
    %c0_i32_0 = arith.constant 0 : i32
    %c0_i32_1 = arith.constant 0 : i32
    return %c0_i32, %c0_i32_0 : i32, i32
  }
  func.func @transform_5(%arg0: i32) -> (i32, i32) {
    %c0_i32 = arith.constant 0 : i32
    %c0_i32_0 = arith.constant 0 : i32
    %c0_i32_1 = arith.constant 0 : i32
    return %c0_i32, %c0_i32_0 : i32, i32
  }
  func.func @transform_6(%arg0: i32) -> i32 {
    %c0_i32 = arith.constant 0 : i32
    %c0_i32_0 = arith.constant 0 : i32
    return %c0_i32 : i32
  }
  func.func @transform_7(%arg0: i32) -> (i32, i32, i32) {
    %c0_i32 = arith.constant 0 : i32
    %c0_i32_0 = arith.constant 0 : i32
    %c0_i32_1 = arith.constant 0 : i32
    return %arg0, %c0_i32, %c0_i32_0 : i32, i32, i32
  }
}

</mosaic_0001>

<llo_original>
// kernel: hydrophobic_forward_core.3
$region0: #{hydrophobic_forward_core.3}
  #allocation0 [shape = 'u32[]', space=smem, size = 0x4, offset = 0x4, fixed_abs, tag = 'smem constant byte address 0x4 - core index']
  #allocation1 [shape = 'u32[144,128]{1,0:T(1,128)}', space=vmem, size = 0x12000, scoped, tag = 'internal scratch']
  %s0 = inlined_call_operand.vmem [shape: f32[2,32,128], index: 0, kind: input, shape index: {}]
  %s1 = inlined_call_operand.vmem [shape: f32[32,32], index: 1, kind: input, shape index: {}]
  %s2 = inlined_call_operand.vmem [shape: f32[32,1], index: 2, kind: input, shape index: {}]
  %s3 = inlined_call_operand.vmem [shape: f32[2,32,1], index: 3, kind: output, shape index: {0}]
  %s4 = inlined_call_operand.vmem [shape: f32[2,32,1], index: 4, kind: output, shape index: {1}]
  %5 = xla_tuple %s3, %s4
  %s6 = sld [smem:[#allocation0]]
  $region61: #{hydrophobic_forward_core.3} parent=0
    _
  %s8 = ssub.s32 1, %s6
  %s9 = scalar_select 0, %s8, %s6
  loop: start=0, step=1, limit=4
  $region2: #{hydrophobic_forward_core.3} parent=0 // loop_pre_header
    _
  $region3: #{hydrophobic_forward_core.3} parent=0 // loop_header
    %s11 = sphi 0, %s15
    %p12 = scmp.ge.s32.totalorder %s11, 4
    %s18 = sphi 0, %s30
    %s19 = sphi 0, %s26
    %s20 = sphi 0, %s18
    %s21 = sphi 0, %s19
    %s22 = sphi 0, %s20
    %s23 = sphi 0, %s21
    %s35 = sphi 0, %s37
    %s38 = sphi 0, %s35
    %s39 = sphi 0, %s38
    %s55 = sphi 0, %s39
    %s59 = sphi 0, %s59
    %s61 = sphi 0, %s59
    %s62 = sphi 0, %s61
    %s76 = sphi 0, %s62
    %s80 = sphi 0, %s80
    %s82 = sphi 0, %s80
    %s83 = sphi 0, %s82
    %s97 = sphi 0, %s83
    %s105 = sphi 0, %s107
    %s108 = sphi 0, %s105
    %s109 = sphi 0, %s108
    %s125 = sphi 0, %s109
    %s133 = sphi 0, %s135
    %s136 = sphi 0, %s133
    %s137 = sphi 0, %s136
    %s153 = sphi 0, %s137
  $region4: #{hydrophobic_forward_core.3} parent=0 // loop_header_branch
    %14 = sbr.rel (%p12) target = $region8
  $region5: #{hydrophobic_forward_core.3} parent=0 // loop_body
    %s16 = ssub.s32 %s11, 1
    %s17 = ssub.s32 %s11, 2
    %s24 = sadd.s32 1, %s19
    %p25 = scmp.ge.s32.totalorder %s24, 1
    %s26 = scalar_select %p25, 0, %s24
    %s27 = sadd.s32 1, %s18
    %s28 = scalar_select %p25, %s27, %s18
    %p29 = scmp.ge.s32.totalorder %s28, 2
    %s30 = scalar_select %p29, 0, %s28
    %s31 = ssub.s32 %s18, %s30
    %s32 = ssub.s32 %s19, %s26
    %s33 = sor.u32 %s31, %s32
    %p34 = scmp.eq.s32.totalorder %s33, 0
    %s36 = sadd.s32 %s35, 1
    %s37 = scalar_select %p34, %s35, %s36
    %p40 = pneg %p34
    %p41 = scmp.eq.s32.totalorder %s11, 1
    %p42 = por %p40, %p41
    %p43 = scmp.ne.s32.totalorder %s35, %s38
    %p44 = scmp.eq.s32.totalorder %s11, 0
    %p45 = por %p43, %p44
    %p46 = scmp.ne.s32.totalorder %s35, %s38
    %p47 = scmp.eq.s32.totalorder %s16, 1
    %p48 = por %p46, %p47
    %p49 = scmp.ne.s32.totalorder %s38, %s39
    %p50 = scmp.eq.s32.totalorder %s16, 0
    %p51 = por %p49, %p50
    %p52 = scmp.ne.s32.totalorder %s38, %s39
    %p53 = scmp.eq.s32.totalorder %s17, 1
    %p54 = por %p52, %p53
    %p56 = scmp.ne.s32.totalorder %s39, %s55
    %p57 = scmp.eq.s32.totalorder %s17, 0
    %p58 = por %p56, %p57
    %s60 = sadd.s32 %s59, 1
    %p63 = scmp.eq.s32.totalorder %s11, 1
    %p64 = scmp.ne.s32.totalorder %s59, %s61
    %p65 = scmp.eq.s32.totalorder %s11, 0
    %p66 = por %p64, %p65
    %p67 = scmp.ne.s32.totalorder %s59, %s61
    %p68 = scmp.eq.s32.totalorder %s16, 1
    %p69 = por %p67, %p68
    %p70 = scmp.ne.s32.totalorder %s61, %s62
    %p71 = scmp.eq.s32.totalorder %s16, 0
    %p72 = por %p70, %p71
    %p73 = scmp.ne.s32.totalorder %s61, %s62
    %p74 = scmp.eq.s32.totalorder %s17, 1
    %p75 = por %p73, %p74
    %p77 = scmp.ne.s32.totalorder %s62, %s76
    %p78 = scmp.eq.s32.totalorder %s17, 0
    %p79 = por %p77, %p78
    %s81 = sadd.s32 %s80, 1
    %p84 = scmp.eq.s32.totalorder %s11, 1
    %p85 = scmp.ne.s32.totalorder %s80, %s82
    %p86 = scmp.eq.s32.totalorder %s11, 0
    %p87 = por %p85, %p86
    %p88 = scmp.ne.s32.totalorder %s80, %s82
    %p89 = scmp.eq.s32.totalorder %s16, 1
    %p90 = por %p88, %p89
    %p91 = scmp.ne.s32.totalorder %s82, %s83
    %p92 = scmp.eq.s32.totalorder %s16, 0
    %p93 = por %p91, %p92
    %p94 = scmp.ne.s32.totalorder %s82, %s83
    %p95 = scmp.eq.s32.totalorder %s17, 1
    %p96 = por %p94, %p95
    %p98 = scmp.ne.s32.totalorder %s83, %s97
    %p99 = scmp.eq.s32.totalorder %s17, 0
    %p100 = por %p98, %p99
    %s101 = sadd.s32 %s18, %s19
    %s102 = sadd.s32 %s30, %s26
    %s103 = ssub.s32 %s101, %s102
    %p104 = scmp.eq.s32.totalorder %s103, 0
    %s106 = sadd.s32 %s105, 1
    %s107 = scalar_select %p104, %s105, %s106
    %p110 = pneg %p104
    %p111 = scmp.eq.s32.totalorder %s11, 1
    %p112 = por %p110, %p111
    %p113 = scmp.ne.s32.totalorder %s105, %s108
    %p114 = scmp.eq.s32.totalorder %s11, 0
    %p115 = por %p113, %p114
    %p116 = scmp.ne.s32.totalorder %s105, %s108
    %p117 = scmp.eq.s32.totalorder %s16, 1
    %p118 = por %p116, %p117
    %p119 = scmp.ne.s32.totalorder %s108, %s109
    %p120 = scmp.eq.s32.totalorder %s16, 0
    %p121 = por %p119, %p120
    %p122 = scmp.ne.s32.totalorder %s108, %s109
    %p123 = scmp.eq.s32.totalorder %s17, 1
    %p124 = por %p122, %p123
    %p126 = scmp.ne.s32.totalorder %s109, %s125
    %p127 = scmp.eq.s32.totalorder %s17, 0
    %p128 = por %p126, %p127
    %s129 = sadd.s32 %s18, %s19
    %s130 = sadd.s32 %s30, %s26
    %s131 = ssub.s32 %s129, %s130
    %p132 = scmp.eq.s32.totalorder %s131, 0
    %s134 = sadd.s32 %s133, 1
    %s135 = scalar_select %p132, %s133, %s134
    %p138 = pneg %p132
    %p139 = scmp.eq.s32.totalorder %s11, 1
    %p140 = por %p138, %p139
    %p141 = scmp.ne.s32.totalorder %s133, %s136
    %p142 = scmp.eq.s32.totalorder %s11, 0
    %p143 = por %p141, %p142
    %p144 = scmp.ne.s32.totalorder %s133, %s136
    %p145 = scmp.eq.s32.totalorder %s16, 1
    %p146 = por %p144, %p145
    %p147 = scmp.ne.s32.totalorder %s136, %s137
    %p148 = scmp.eq.s32.totalorder %s16, 0
    %p149 = por %p147, %p148
    %p150 = scmp.ne.s32.totalorder %s136, %s137
    %p151 = scmp.eq.s32.totalorder %s17, 1
    %p152 = por %p150, %p151
    %p154 = scmp.ne.s32.totalorder %s137, %s153
    %p155 = scmp.eq.s32.totalorder %s17, 0
    %p156 = por %p154, %p155
    %p157 = scmp.le.s32.totalorder 1, %s11
    %p158 = scmp.lt.s32.totalorder %s11, 3
    %p159 = pnand %p157, %p158
    %p160 = pneg %p159
    // Predicated region
    $region9: #{hydrophobic_forward_core.3} parent=5 // pred_check
      _
    $region10: #{hydrophobic_forward_core.3} parent=5 // pred_check_branch
      %162 = sbr.rel (%p159) target = $region12
    $region11: #{hydrophobic_forward_core.3} parent=5 // pred_region
      %s163 = ssub.s32 %s11, 1
      // Predicated region
      $region13: #{hydrophobic_forward_core.3} parent=11 // pred_check
        %p164 = pneg %p72
      $region14: #{hydrophobic_forward_core.3} parent=11 // pred_check_branch
        %166 = sbr.rel (%p164) target = $region16
      $region15: #{hydrophobic_forward_core.3} parent=11 // pred_region
        _
      $region16: #{hydrophobic_forward_core.3} parent=11 // pred_fallthru
        _
      // Predicated region
      $region17: #{hydrophobic_forward_core.3} parent=11 // pred_check
        %p167 = pneg %p93
      $region18: #{hydrophobic_forward_core.3} parent=11 // pred_check_branch
        %169 = sbr.rel (%p167) target = $region20
      $region19: #{hydrophobic_forward_core.3} parent=11 // pred_region
        _
      $region20: #{hydrophobic_forward_core.3} parent=11 // pred_fallthru
        _
    $region12: #{hydrophobic_forward_core.3} parent=5 // pred_fallthru
      _
    %p170 = scmp.lt.s32.totalorder %s11, 2
    // Predicated region
    $region21: #{hydrophobic_forward_core.3} parent=5 // pred_check
      %p171 = pneg %p170
    $region22: #{hydrophobic_forward_core.3} parent=5 // pred_check_branch
      %173 = sbr.rel (%p171) target = $region24
    $region23: #{hydrophobic_forward_core.3} parent=5 // pred_region
      // Predicated region
      $region25: #{hydrophobic_forward_core.3} parent=23 // pred_check
        %p174 = pneg %p45
      $region26: #{hydrophobic_forward_core.3} parent=23 // pred_check_branch
        %176 = sbr.rel (%p174) target = $region28
      $region27: #{hydrophobic_forward_core.3} parent=23 // pred_region
        %p177 = scmp.lt.s32.totalorder %s18, 1
        %s178 = scalar_select %p177, %s18, 1
        %p179 = scmp.lt.s32.totalorder %s19, 0
        %s180 = scalar_select %p179, %s19, 0
        %s181 = smul.addr %s178, 4
        %s182 = sadd.s32 %s180, %s181
        %s183 = smul.addr %s182, 8
        %s184 = scalar_lea.vmem %s0, %s183
      $region28: #{hydrophobic_forward_core.3} parent=23 // pred_fallthru
        _
    $region24: #{hydrophobic_forward_core.3} parent=5 // pred_fallthru
      _
    %p185 = scmp.le.s32.totalorder 1, %s11
    %p186 = scmp.lt.s32.totalorder %s11, 3
    %p187 = pnand %p185, %p186
    %p188 = pneg %p187
    // Predicated region
    $region29: #{hydrophobic_forward_core.3} parent=5 // pred_check
      _
    $region30: #{hydrophobic_forward_core.3} parent=5 // pred_check_branch
      %190 = sbr.rel (%p187) target = $region32
    $region31: #{hydrophobic_forward_core.3} parent=5 // pred_region
      %s191 = ssub.s32 %s11, 1
      %p192 = scmp.lt.s32.totalorder %s20, 1
      %s193 = scalar_select %p192, %s20, 1
      %p194 = scmp.lt.s32.totalorder %s21, 0
      %s195 = scalar_select %p194, %s21, 0
      %s196 = smul.addr %s193, 4
      %s197 = sadd.s32 %s195, %s196
      %s198 = smul.addr %s197, 8
      %s199 = scalar_lea.vmem %s0, %s198
      %p200 = pneg %p51
      %p201 = pneg %p48
      %p202 = pneg %p72
      %p203 = pneg %p69
      %p204 = pneg %p93
      %p205 = pneg %p90
      %p206 = pneg %p121
      %p207 = pneg %p118
      %s208 = sadd.s32 %s20, %s21
      %p209 = scmp.lt.s32.totalorder %s208, 1
      %s210 = scalar_select %p209, %s208, 1
      %s211 = smul.addr %s210, 4
      %s212 = smul.addr %s211, 8
      %s213 = scalar_lea.vmem %s3, %s212
      %p214 = pneg %p149
      %p215 = pneg %p146
      %s216 = sadd.s32 %s20, %s21
      %p217 = scmp.lt.s32.totalorder %s216, 1
      %s218 = scalar_select %p217, %s216, 1
      %s219 = smul.addr %s218, 4
      %s220 = smul.addr %s219, 8
      %s221 = scalar_lea.vmem %s4, %s220
      %p222 = scmp.lt.s32.totalorder %s20, 1
      %s223 = scalar_select %p222, %s20, 1
      %p224 = scmp.lt.s32.totalorder %s21, 0
      %s225 = scalar_select %p224, %s21, 0
      %s226 = smul.addr %s223, 4
      %s227 = sadd.s32 %s225, %s226
      %s228 = smul.addr %s227, 8
      %s229 = scalar_lea.vmem %s0, %s228
      %s230 = sadd.s32 %s20, %s21
      %p231 = scmp.lt.s32.totalorder %s230, 1
      %s232 = scalar_select %p231, %s230, 1
      %s233 = smul.addr %s232, 4
      %s234 = smul.addr %s233, 8
      %s235 = scalar_lea.vmem %s3, %s234
      %s236 = sadd.s32 %s20, %s21
      %s237 = sadd.s32 %s20, %s21
      %p238 = scmp.lt.s32.totalorder %s237, 1
      %s239 = scalar_select %p238, %s237, 1
      %s240 = smul.addr %s239, 4
      %s241 = smul.addr %s240, 8
      %s242 = scalar_lea.vmem %s4, %s241
      %s243 = sadd.s32 %s20, %s21
      %v244 = vld [vmem:[%s1] sm:$0xff]
      %v245 = vld [vmem:[%s1 + $0x8] sm:$0xff]
      %v246 = vld [vmem:[%s1 + $0x10] sm:$0xff]
      %v247 = vld [vmem:[%s1 + $0x18] sm:$0xff]
      %v248 = vld [vmem:[%s229] sm:$0xff]
      %v249 = vld [vmem:[%s229 + $0x8] sm:$0xff]
      %v250 = vld [vmem:[%s229 + $0x10] sm:$0xff]
      %v251 = vld [vmem:[%s229 + $0x18] sm:$0xff]
      %v252 = vld [vmem:[%s2] sm:$0xff]
      %v253 = vld [vmem:[%s2 + $0x8] sm:$0xff]
      %v254 = vld [vmem:[%s2 + $0x10] sm:$0xff]
      %v255 = vld [vmem:[%s2 + $0x18] sm:$0xff]
      %257 = vset.pattern.permute.xlu0 0
      %258 = vperm.xlu0 %257, %v252
      %v259 = vpop.permute.xlu0 %258
      %262 = vset.pattern.permute.xlu0 0
      %263 = vperm.xlu0 %262, %v253
      %v264 = vpop.permute.xlu0 %263
      %267 = vset.pattern.permute.xlu0 0
      %268 = vperm.xlu0 %267, %v254
      %v269 = vpop.permute.xlu0 %268
      %272 = vset.pattern.permute.xlu0 0
      %273 = vperm.xlu0 %272, %v255
      %v274 = vpop.permute.xlu0 %273
      %vm276 = vcmask 261120
      %v278 = vsel %vm276, %v244, 0
      %v281 = vsel %vm276, %v245, 0
      %v284 = vsel %vm276, %v246, 0
      %v287 = vsel %vm276, %v247, 0
      %289 = vmatprep.subr.mxu0 0.0
      %290 = vmatpush1.msra.mxu0 0.0
      %291 = vmatprep.subr.mxu0 0.0
      %292 = vmatpush1.msra.mxu0 0.0
      %293 = vmatprep.subr.mxu0 0.0
      %294 = vmatpush1.msra.mxu0 0.0
      %295 = vmatprep.subr.mxu0 0.0
      %296 = vmatpush1.msra.mxu0 0.0
      %297 = vmatprep.subr.mxu0 0.0
      %298 = vmatpush1.msra.mxu0 0.0
      %299 = vmatprep.subr.mxu0 0.0
      %300 = vmatpush1.msra.mxu0 0.0
      %301 = vmatprep.subr.mxu0 0.0
      %302 = vmatpush1.msra.mxu0 0.0
      %303 = vmatprep.subr.mxu0 0.0
      %304 = vmatpush1.msra.mxu0 0.0
      %305 = vmatprep.subr.mxu0 0.0
      %306 = vmatpush1.msra.mxu0 0.0
      %307 = vmatprep.subr.mxu0 0.0
      %308 = vmatpush1.msra.mxu0 0.0
      %309 = vmatprep.subr.mxu0 0.0
      %310 = vmatpush1.msra.mxu0 0.0
      %311 = vmatprep.subr.mxu0 0.0
      %312 = vmatpush1.msra.mxu0 0.0
      %313 = vmatprep.subr.mxu0 0.0
      %314 = vmatpush1.msra.mxu0 %v251
      %315 = vmatprep.subr.mxu0 0.0
      %316 = vmatpush1.msra.mxu0 %v250
      %317 = vmatprep.subr.mxu0 0.0
      %318 = vmatpush1.msra.mxu0 %v249
      %319 = vmatprep.subr.mxu0 0.0
      %320 = vmatpush1.msra.mxu0 %v248
      %321 = vmatprep.subr.mxu0 0.0
      %322 = vmatpush2.msra.mxu0 0.0
      %323 = vmatprep.subr.mxu0 0.0
      %324 = vmatpush2.msra.mxu0 0.0
      %325 = vmatprep.subr.mxu0 0.0
      %326 = vmatpush2.msra.mxu0 0.0
      %327 = vmatprep.subr.mxu0 0.0
      %328 = vmatpush2.msra.mxu0 0.0
      %329 = vmatprep.subr.mxu0 0.0
      %330 = vmatpush2.msra.mxu0 0.0
      %331 = vmatprep.subr.mxu0 0.0
      %332 = vmatpush2.msra.mxu0 0.0
      %333 = vmatprep.subr.mxu0 0.0
      %334 = vmatpush2.msra.mxu0 0.0
      %335 = vmatprep.subr.mxu0 0.0
      %336 = vmatpush2.msra.mxu0 0.0
      %337 = vmatprep.subr.mxu0 0.0
      %338 = vmatpush2.msra.mxu0 0.0
      %339 = vmatprep.subr.mxu0 0.0
      %340 = vmatpush2.msra.mxu0 0.0
      %341 = vmatprep.subr.mxu0 0.0
      %342 = vmatpush2.msra.mxu0 0.0
      %343 = vmatprep.subr.mxu0 0.0
      %344 = vmatpush2.msra.mxu0 0.0
      %345 = vmatprep.subr.mxu0 0.0
      %346 = vmatpush2.msra.mxu0 0.0
      %347 = vmatprep.subr.mxu0 0.0
      %348 = vmatpush2.msra.mxu0 0.0
      %349 = vmatprep.subr.mxu0 0.0
      %350 = vmatpush2.msra.mxu0 0.0
      %351 = vmatprep.subr.mxu0 0.0
      %352 = vmatpush2.msra.mxu0 0.0
      %353 = vmatprep.mubr.f32.mxu0 0.0
      %354 = vmatmul.mubr.f32.gmra.mxu0 %v278
      %v355 = vpop.f32.mrf.mxu0
      %v356 = vadd.f32 %v259, %v355
      %v357 = vpop.f32.mrf.mxu0
      %358 = vmatprep.mubr.f32.mxu0 0.0
      %359 = vmatmul.mubr.f32.gmra.mxu0 %v281
      %v360 = vpop.f32.mrf.mxu0
      %v361 = vadd.f32 %v264, %v360
      %v362 = vpop.f32.mrf.mxu0
      %363 = vmatprep.mubr.f32.mxu0 0.0
      %364 = vmatmul.mubr.f32.gmra.mxu0 %v284
      %v365 = vpop.f32.mrf.mxu0
      %v366 = vadd.f32 %v269, %v365
      %v367 = vpop.f32.mrf.mxu0
      %368 = vmatprep.mubr.f32.mxu0 0.0
      %369 = vmatmul.mubr.f32.gmra.mxu0 %v287
      %v370 = vpop.f32.mrf.mxu0
      %v371 = vadd.f32 %v274, %v370
      %v372 = vpop.f32.mrf.mxu0
      %373 = vdwg.mxu0
      %v374 = vmax.f32 %v356, 0.0
      %v375 = vmax.f32 %v361, 0.0
      %v376 = vmax.f32 %v366, 0.0
      %v377 = vmax.f32 %v371, 0.0
      %p378 = scmp.ne.s32.totalorder %s21, 0
      // Predicated region
      $region33: #{hydrophobic_forward_core.3} parent=31 // pred_check
        %p379 = pneg %p378
      $region34: #{hydrophobic_forward_core.3} parent=31 // pred_check_branch
        %381 = sbr.rel (%p379) target = $region36
      $region35: #{hydrophobic_forward_core.3} parent=31 // pred_region
        %382 = vadd.xlane.f32.xlu0 %v374
        %v383 = vpop.xlane.xlu0 %382
        %384 = vadd.xlane.f32.xlu0 %v375
        %v385 = vpop.xlane.xlu0 %384
        %386 = vadd.xlane.f32.xlu0 %v376
        %v387 = vpop.xlane.xlu0 %386
        %388 = vadd.xlane.f32.xlu0 %v377
        %v389 = vpop.xlane.xlu0 %388
        %vm390 = vcmask 7168
        %391 = vst.msk [vmem:[%s235] sm:$0xff] %vm390, %v383
        %392 = vst.msk [vmem:[%s235 + $0x8] sm:$0xff] %vm390, %v385
        %393 = vst.msk [vmem:[%s235 + $0x10] sm:$0xff] %vm390, %v387
        %394 = vst.msk [vmem:[%s235 + $0x18] sm:$0xff] %vm390, %v389
        %v395 = vmul.f32 %v374, %v374
        %v396 = vmul.f32 %v375, %v375
        %v397 = vmul.f32 %v376, %v376
        %v398 = vmul.f32 %v377, %v377
        %399 = vadd.xlane.f32.xlu0 %v395
        %v400 = vpop.xlane.xlu0 %399
        %401 = vadd.xlane.f32.xlu0 %v396
        %v402 = vpop.xlane.xlu0 %401
        %403 = vadd.xlane.f32.xlu0 %v397
        %v404 = vpop.xlane.xlu0 %403
        %405 = vadd.xlane.f32.xlu0 %v398
        %v406 = vpop.xlane.xlu0 %405
        %407 = vst.msk [vmem:[%s242] sm:$0xff] %vm390, %v400
        %408 = vst.msk [vmem:[%s242 + $0x8] sm:$0xff] %vm390, %v402
        %409 = vst.msk [vmem:[%s242 + $0x10] sm:$0xff] %vm390, %v404
        %410 = vst.msk [vmem:[%s242 + $0x18] sm:$0xff] %vm390, %v406
      $region36: #{hydrophobic_forward_core.3} parent=31 // pred_fallthru
        _
      %p411 = scmp.eq.s32.totalorder %s21, 0
      // Predicated region
      $region37: #{hydrophobic_forward_core.3} parent=31 // pred_check
        %p412 = pneg %p411
      $region38: #{hydrophobic_forward_core.3} parent=31 // pred_check_branch
        %414 = sbr.rel (%p412) target = $region40
      $region39: #{hydrophobic_forward_core.3} parent=31 // pred_region
        %v415 = vlaneseq
        %v416 = vand.u32 %v415, 127
        %s417 = smul.u32 %s21, 128
        %v418 = vstv %s417
        %v419 = vadd.s32 %v416, %v418
        %vm420 = vcmp.lt.s32.totalorder %v419, 8
        %v421 = vsel %vm420, 1, 0
        %vm422 = vcmp.eq.s32.totalorder %v421, 1
        %v423 = vsel %vm422, %v374, 0.0
        %v424 = vsel %vm422, %v375, 0.0
        %v425 = vsel %vm422, %v376, 0.0
        %v426 = vsel %vm422, %v377, 0.0
        %427 = vadd.xlane.f32.xlu0 %v423
        %v428 = vpop.xlane.xlu0 %427
        %429 = vadd.xlane.f32.xlu0 %v424
        %v430 = vpop.xlane.xlu0 %429
        %431 = vadd.xlane.f32.xlu0 %v425
        %v432 = vpop.xlane.xlu0 %431
        %433 = vadd.xlane.f32.xlu0 %v426
        %v434 = vpop.xlane.xlu0 %433
        %vm435 = vcmask 7168
        %436 = vst.msk [vmem:[%s235] sm:$0xff] %vm435, %v428
        %437 = vst.msk [vmem:[%s235 + $0x8] sm:$0xff] %vm435, %v430
        %438 = vst.msk [vmem:[%s235 + $0x10] sm:$0xff] %vm435, %v432
        %439 = vst.msk [vmem:[%s235 + $0x18] sm:$0xff] %vm435, %v434
        %v440 = vmul.f32 %v423, %v423
        %v441 = vmul.f32 %v424, %v424
        %v442 = vmul.f32 %v425, %v425
        %v443 = vmul.f32 %v426, %v426
        %444 = vadd.xlane.f32.xlu0 %v440
        %v445 = vpop.xlane.xlu0 %444
        %446 = vadd.xlane.f32.xlu0 %v441
        %v447 = vpop.xlane.xlu0 %446
        %448 = vadd.xlane.f32.xlu0 %v442
        %v449 = vpop.xlane.xlu0 %448
        %450 = vadd.xlane.f32.xlu0 %v443
        %v451 = vpop.xlane.xlu0 %450
        %452 = vst.msk [vmem:[%s242] sm:$0xff] %vm435, %v445
        %453 = vst.msk [vmem:[%s242 + $0x8] sm:$0xff] %vm435, %v447
        %454 = vst.msk [vmem:[%s242 + $0x10] sm:$0xff] %vm435, %v449
        %455 = vst.msk [vmem:[%s242 + $0x18] sm:$0xff] %vm435, %v451
      $region40: #{hydrophobic_forward_core.3} parent=31 // pred_fallthru
        _
      %s456 = sadd.s32 %s20, %s21
      %p457 = scmp.lt.s32.totalorder %s456, 1
      %s458 = scalar_select %p457, %s456, 1
      %s459 = smul.addr %s458, 4
      %s460 = smul.addr %s459, 8
      %s461 = scalar_lea.vmem %s3, %s460
      %s462 = sadd.s32 %s20, %s21
      %p463 = scmp.lt.s32.totalorder %s462, 1
      %s464 = scalar_select %p463, %s462, 1
      %s465 = smul.addr %s464, 4
      %s466 = smul.addr %s465, 8
      %s467 = scalar_lea.vmem %s4, %s466
      // Predicated region
      $region41: #{hydrophobic_forward_core.3} parent=31 // pred_check
        %p468 = pneg %p118
      $region42: #{hydrophobic_forward_core.3} parent=31 // pred_check_branch
        %470 = sbr.rel (%p468) target = $region44
      $region43: #{hydrophobic_forward_core.3} parent=31 // pred_region
        %s471 = sadd.s32 %s20, %s21
      $region44: #{hydrophobic_forward_core.3} parent=31 // pred_fallthru
        _
      // Predicated region
      $region45: #{hydrophobic_forward_core.3} parent=31 // pred_check
        %p472 = pneg %p146
      $region46: #{hydrophobic_forward_core.3} parent=31 // pred_check_branch
        %474 = sbr.rel (%p472) target = $region48
      $region47: #{hydrophobic_forward_core.3} parent=31 // pred_region
        %s475 = sadd.s32 %s20, %s21
      $region48: #{hydrophobic_forward_core.3} parent=31 // pred_fallthru
        _
    $region32: #{hydrophobic_forward_core.3} parent=5 // pred_fallthru
      _
    %p476 = scmp.le.s32.totalorder 2, %s11
    // Predicated region
    $region49: #{hydrophobic_forward_core.3} parent=5 // pred_check
      %p477 = pneg %p476
    $region50: #{hydrophobic_forward_core.3} parent=5 // pred_check_branch
      %479 = sbr.rel (%p477) target = $region52
    $region51: #{hydrophobic_forward_core.3} parent=5 // pred_region
      %s480 = ssub.s32 %s11, 2
      // Predicated region
      $region53: #{hydrophobic_forward_core.3} parent=51 // pred_check
        %p481 = pneg %p124
      $region54: #{hydrophobic_forward_core.3} parent=51 // pred_check_branch
        %483 = sbr.rel (%p481) target = $region56
      $region55: #{hydrophobic_forward_core.3} parent=51 // pred_region
        %s484 = sadd.s32 %s22, %s23
        %p485 = scmp.lt.s32.totalorder %s484, 1
        %s486 = scalar_select %p485, %s484, 1
        %s487 = smul.addr %s486, 4
        %s488 = smul.addr %s487, 8
        %s489 = scalar_lea.vmem %s3, %s488
      $region56: #{hydrophobic_forward_core.3} parent=51 // pred_fallthru
        _
      // Predicated region
      $region57: #{hydrophobic_forward_core.3} parent=51 // pred_check
        %p490 = pneg %p152
      $region58: #{hydrophobic_forward_core.3} parent=51 // pred_check_branch
        %492 = sbr.rel (%p490) target = $region60
      $region59: #{hydrophobic_forward_core.3} parent=51 // pred_region
        %s493 = sadd.s32 %s22, %s23
        %p494 = scmp.lt.s32.totalorder %s493, 1
        %s495 = scalar_select %p494, %s493, 1
        %s496 = smul.addr %s495, 4
        %s497 = smul.addr %s496, 8
        %s498 = scalar_lea.vmem %s4, %s497
      $region60: #{hydrophobic_forward_core.3} parent=51 // pred_fallthru
        _
    $region52: #{hydrophobic_forward_core.3} parent=5 // pred_fallthru
      _
  $region6: #{hydrophobic_forward_core.3} parent=0 // loop_footer
    %s15 = sadd.s32 1, %s11
  $region7: #{hydrophobic_forward_core.3} parent=0 // loop_footer_branch
    %10 = sbr.rel target = $region3
  $region8: #{hydrophobic_forward_core.3} parent=0 // loop_exit
    _

// kernel: hydrophobic_forward_core.4
$region0: #{hydrophobic_forward_core.4}
  #allocation0 [shape = 'u32[]', space=smem, size = 0x4, offset = 0x4, fixed_abs, tag = 'smem constant byte address 0x4 - core index']
  #allocation1 [shape = 'u32[144,128]{1,0:T(1,128)}', space=vmem, size = 0x12000, scoped, tag = 'internal scratch']
  #allocation2 [shape = 'f32[1]{0:T(128)S(6)}', space=smem, size = 0x200, scoped, tag = 'scoped memory for hydrophobic_forward_core.4']
  %s0 = inlined_call_operand.vmem [shape: f32[2,32,128], index: 0, kind: input, shape index: {}]
  %s1 = inlined_call_operand.vmem [shape: f32[32,32], index: 1, kind: input, shape index: {}]
  %s2 = inlined_call_operand.vmem [shape: f32[32,1], index: 2, kind: input, shape index: {}]
  %s3 = inlined_call_operand.vmem [shape: f32[32,1], index: 3, kind: input, shape index: {}]
  %s4 = inlined_call_operand.vmem [shape: f32[32,1], index: 4, kind: input, shape index: {}]
  %s5 = inlined_call_operand.vmem [shape: f32[16,32], index: 5, kind: input, shape index: {}]
  %s6 = inlined_call_operand.vmem [shape: f32[16,1], index: 6, kind: input, shape index: {}]
  %s7 = inlined_call_operand.vmem [shape: f32[16,1], index: 7, kind: input, shape index: {}]
  %s8 = inlined_call_operand.<no memory space> [shape: f32[1], index: 8, kind: input, shape index: {}]
  %s9 = inlined_call_operand.vmem [shape: f32[2,1,128], index: 9, kind: output, shape index: {}]
  %s10 = sld [smem:[#allocation0]]
  $region69: #{hydrophobic_forward_core.4} parent=0
    _
  %s12 = ssub.s32 1, %s10
  %s13 = scalar_select 0, %s12, %s10
  %14 = sst [smem:[#allocation2]] %s8
  loop: start=0, step=1, limit=4
  $region2: #{hydrophobic_forward_core.4} parent=0 // loop_pre_header
    _
  $region3: #{hydrophobic_forward_core.4} parent=0 // loop_header
    %s16 = sphi 0, %s20
    %p17 = scmp.ge.s32.totalorder %s16, 4
    %s23 = sphi 0, %s35
    %s24 = sphi 0, %s31
    %s25 = sphi 0, %s23
    %s26 = sphi 0, %s24
    %s27 = sphi 0, %s25
    %s28 = sphi 0, %s26
    %s40 = sphi 0, %s42
    %s43 = sphi 0, %s40
    %s44 = sphi 0, %s43
    %s60 = sphi 0, %s44
    %s64 = sphi 0, %s64
    %s66 = sphi 0, %s64
    %s67 = sphi 0, %s66
    %s81 = sphi 0, %s67
    %s85 = sphi 0, %s85
    %s87 = sphi 0, %s85
    %s88 = sphi 0, %s87
    %s102 = sphi 0, %s88
    %s106 = sphi 0, %s106
    %s108 = sphi 0, %s106
    %s109 = sphi 0, %s108
    %s123 = sphi 0, %s109
    %s127 = sphi 0, %s127
    %s129 = sphi 0, %s127
    %s130 = sphi 0, %s129
    %s144 = sphi 0, %s130
    %s148 = sphi 0, %s148
    %s150 = sphi 0, %s148
    %s151 = sphi 0, %s150
    %s165 = sphi 0, %s151
    %s169 = sphi 0, %s169
    %s171 = sphi 0, %s169
    %s172 = sphi 0, %s171
    %s186 = sphi 0, %s172
    %s190 = sphi 0, %s190
    %s192 = sphi 0, %s190
    %s193 = sphi 0, %s192
    %s207 = sphi 0, %s193
    %s211 = sphi 0, %s211
    %s213 = sphi 0, %s211
    %s214 = sphi 0, %s213
    %s228 = sphi 0, %s214
    %s236 = sphi 0, %s238
    %s239 = sphi 0, %s236
    %s240 = sphi 0, %s239
    %s256 = sphi 0, %s240
  $region4: #{hydrophobic_forward_core.4} parent=0 // loop_header_branch
    %19 = sbr.rel (%p17) target = $region8
  $region5: #{hydrophobic_forward_core.4} parent=0 // loop_body
    %s21 = ssub.s32 %s16, 1
    %s22 = ssub.s32 %s16, 2
    %s29 = sadd.s32 1, %s24
    %p30 = scmp.ge.s32.totalorder %s29, 1
    %s31 = scalar_select %p30, 0, %s29
    %s32 = sadd.s32 1, %s23
    %s33 = scalar_select %p30, %s32, %s23
    %p34 = scmp.ge.s32.totalorder %s33, 2
    %s35 = scalar_select %p34, 0, %s33
    %s36 = ssub.s32 %s23, %s35
    %s37 = ssub.s32 %s24, %s31
    %s38 = sor.u32 %s36, %s37
    %p39 = scmp.eq.s32.totalorder %s38, 0
    %s41 = sadd.s32 %s40, 1
    %s42 = scalar_select %p39, %s40, %s41
    %p45 = pneg %p39
    %p46 = scmp.eq.s32.totalorder %s16, 1
    %p47 = por %p45, %p46
    %p48 = scmp.ne.s32.totalorder %s40, %s43
    %p49 = scmp.eq.s32.totalorder %s16, 0
    %p50 = por %p48, %p49
    %p51 = scmp.ne.s32.totalorder %s40, %s43
    %p52 = scmp.eq.s32.totalorder %s21, 1
    %p53 = por %p51, %p52
    %p54 = scmp.ne.s32.totalorder %s43, %s44
    %p55 = scmp.eq.s32.totalorder %s21, 0
    %p56 = por %p54, %p55
    %p57 = scmp.ne.s32.totalorder %s43, %s44
    %p58 = scmp.eq.s32.totalorder %s22, 1
    %p59 = por %p57, %p58
    %p61 = scmp.ne.s32.totalorder %s44, %s60
    %p62 = scmp.eq.s32.totalorder %s22, 0
    %p63 = por %p61, %p62
    %s65 = sadd.s32 %s64, 1
    %p68 = scmp.eq.s32.totalorder %s16, 1
    %p69 = scmp.ne.s32.totalorder %s64, %s66
    %p70 = scmp.eq.s32.totalorder %s16, 0
    %p71 = por %p69, %p70
    %p72 = scmp.ne.s32.totalorder %s64, %s66
    %p73 = scmp.eq.s32.totalorder %s21, 1
    %p74 = por %p72, %p73
    %p75 = scmp.ne.s32.totalorder %s66, %s67
    %p76 = scmp.eq.s32.totalorder %s21, 0
    %p77 = por %p75, %p76
    %p78 = scmp.ne.s32.totalorder %s66, %s67
    %p79 = scmp.eq.s32.totalorder %s22, 1
    %p80 = por %p78, %p79
    %p82 = scmp.ne.s32.totalorder %s67, %s81
    %p83 = scmp.eq.s32.totalorder %s22, 0
    %p84 = por %p82, %p83
    %s86 = sadd.s32 %s85, 1
    %p89 = scmp.eq.s32.totalorder %s16, 1
    %p90 = scmp.ne.s32.totalorder %s85, %s87
    %p91 = scmp.eq.s32.totalorder %s16, 0
    %p92 = por %p90, %p91
    %p93 = scmp.ne.s32.totalorder %s85, %s87
    %p94 = scmp.eq.s32.totalorder %s21, 1
    %p95 = por %p93, %p94
    %p96 = scmp.ne.s32.totalorder %s87, %s88
    %p97 = scmp.eq.s32.totalorder %s21, 0
    %p98 = por %p96, %p97
    %p99 = scmp.ne.s32.totalorder %s87, %s88
    %p100 = scmp.eq.s32.totalorder %s22, 1
    %p101 = por %p99, %p100
    %p103 = scmp.ne.s32.totalorder %s88, %s102
    %p104 = scmp.eq.s32.totalorder %s22, 0
    %p105 = por %p103, %p104
    %s107 = sadd.s32 %s106, 1
    %p110 = scmp.eq.s32.totalorder %s16, 1
    %p111 = scmp.ne.s32.totalorder %s106, %s108
    %p112 = scmp.eq.s32.totalorder %s16, 0
    %p113 = por %p111, %p112
    %p114 = scmp.ne.s32.totalorder %s106, %s108
    %p115 = scmp.eq.s32.totalorder %s21, 1
    %p116 = por %p114, %p115
    %p117 = scmp.ne.s32.totalorder %s108, %s109
    %p118 = scmp.eq.s32.totalorder %s21, 0
    %p119 = por %p117, %p118
    %p120 = scmp.ne.s32.totalorder %s108, %s109
    %p121 = scmp.eq.s32.totalorder %s22, 1
    %p122 = por %p120, %p121
    %p124 = scmp.ne.s32.totalorder %s109, %s123
    %p125 = scmp.eq.s32.totalorder %s22, 0
    %p126 = por %p124, %p125
    %s128 = sadd.s32 %s127, 1
    %p131 = scmp.eq.s32.totalorder %s16, 1
    %p132 = scmp.ne.s32.totalorder %s127, %s129
    %p133 = scmp.eq.s32.totalorder %s16, 0
    %p134 = por %p132, %p133
    %p135 = scmp.ne.s32.totalorder %s127, %s129
    %p136 = scmp.eq.s32.totalorder %s21, 1
    %p137 = por %p135, %p136
    %p138 = scmp.ne.s32.totalorder %s129, %s130
    %p139 = scmp.eq.s32.totalorder %s21, 0
    %p140 = por %p138, %p139
    %p141 = scmp.ne.s32.totalorder %s129, %s130
    %p142 = scmp.eq.s32.totalorder %s22, 1
    %p143 = por %p141, %p142
    %p145 = scmp.ne.s32.totalorder %s130, %s144
    %p146 = scmp.eq.s32.totalorder %s22, 0
    %p147 = por %p145, %p146
    %s149 = sadd.s32 %s148, 1
    %p152 = scmp.eq.s32.totalorder %s16, 1
    %p153 = scmp.ne.s32.totalorder %s148, %s150
    %p154 = scmp.eq.s32.totalorder %s16, 0
    %p155 = por %p153, %p154
    %p156 = scmp.ne.s32.totalorder %s148, %s150
    %p157 = scmp.eq.s32.totalorder %s21, 1
    %p158 = por %p156, %p157
    %p159 = scmp.ne.s32.totalorder %s150, %s151
    %p160 = scmp.eq.s32.totalorder %s21, 0
    %p161 = por %p159, %p160
    %p162 = scmp.ne.s32.totalorder %s150, %s151
    %p163 = scmp.eq.s32.totalorder %s22, 1
    %p164 = por %p162, %p163
    %p166 = scmp.ne.s32.totalorder %s151, %s165
    %p167 = scmp.eq.s32.totalorder %s22, 0
    %p168 = por %p166, %p167
    %s170 = sadd.s32 %s169, 1
    %p173 = scmp.eq.s32.totalorder %s16, 1
    %p174 = scmp.ne.s32.totalorder %s169, %s171
    %p175 = scmp.eq.s32.totalorder %s16, 0
    %p176 = por %p174, %p175
    %p177 = scmp.ne.s32.totalorder %s169, %s171
    %p178 = scmp.eq.s32.totalorder %s21, 1
    %p179 = por %p177, %p178
    %p180 = scmp.ne.s32.totalorder %s171, %s172
    %p181 = scmp.eq.s32.totalorder %s21, 0
    %p182 = por %p180, %p181
    %p183 = scmp.ne.s32.totalorder %s171, %s172
    %p184 = scmp.eq.s32.totalorder %s22, 1
    %p185 = por %p183, %p184
    %p187 = scmp.ne.s32.totalorder %s172, %s186
    %p188 = scmp.eq.s32.totalorder %s22, 0
    %p189 = por %p187, %p188
    %s191 = sadd.s32 %s190, 1
    %p194 = scmp.eq.s32.totalorder %s16, 1
    %p195 = scmp.ne.s32.totalorder %s190, %s192
    %p196 = scmp.eq.s32.totalorder %s16, 0
    %p197 = por %p195, %p196
    %p198 = scmp.ne.s32.totalorder %s190, %s192
    %p199 = scmp.eq.s32.totalorder %s21, 1
    %p200 = por %p198, %p199
    %p201 = scmp.ne.s32.totalorder %s192, %s193
    %p202 = scmp.eq.s32.totalorder %s21, 0
    %p203 = por %p201, %p202
    %p204 = scmp.ne.s32.totalorder %s192, %s193
    %p205 = scmp.eq.s32.totalorder %s22, 1
    %p206 = por %p204, %p205
    %p208 = scmp.ne.s32.totalorder %s193, %s207
    %p209 = scmp.eq.s32.totalorder %s22, 0
    %p210 = por %p208, %p209
    %s212 = sadd.s32 %s211, 1
    %p215 = scmp.eq.s32.totalorder %s16, 1
    %p216 = scmp.ne.s32.totalorder %s211, %s213
    %p217 = scmp.eq.s32.totalorder %s16, 0
    %p218 = por %p216, %p217
    %p219 = scmp.ne.s32.totalorder %s211, %s213
    %p220 = scmp.eq.s32.totalorder %s21, 1
    %p221 = por %p219, %p220
    %p222 = scmp.ne.s32.totalorder %s213, %s214
    %p223 = scmp.eq.s32.totalorder %s21, 0
    %p224 = por %p222, %p223
    %p225 = scmp.ne.s32.totalorder %s213, %s214
    %p226 = scmp.eq.s32.totalorder %s22, 1
    %p227 = por %p225, %p226
    %p229 = scmp.ne.s32.totalorder %s214, %s228
    %p230 = scmp.eq.s32.totalorder %s22, 0
    %p231 = por %p229, %p230
    %s232 = ssub.s32 %s23, %s35
    %s233 = ssub.s32 %s24, %s31
    %s234 = sor.u32 %s232, %s233
    %p235 = scmp.eq.s32.totalorder %s234, 0
    %s237 = sadd.s32 %s236, 1
    %s238 = scalar_select %p235, %s236, %s237
    %p241 = pneg %p235
    %p242 = scmp.eq.s32.totalorder %s16, 1
    %p243 = por %p241, %p242
    %p244 = scmp.ne.s32.totalorder %s236, %s239
    %p245 = scmp.eq.s32.totalorder %s16, 0
    %p246 = por %p244, %p245
    %p247 = scmp.ne.s32.totalorder %s236, %s239
    %p248 = scmp.eq.s32.totalorder %s21, 1
    %p249 = por %p247, %p248
    %p250 = scmp.ne.s32.totalorder %s239, %s240
    %p251 = scmp.eq.s32.totalorder %s21, 0
    %p252 = por %p250, %p251
    %p253 = scmp.ne.s32.totalorder %s239, %s240
    %p254 = scmp.eq.s32.totalorder %s22, 1
    %p255 = por %p253, %p254
    %p257 = scmp.ne.s32.totalorder %s240, %s256
    %p258 = scmp.eq.s32.totalorder %s22, 0
    %p259 = por %p257, %p258
    %p260 = scmp.le.s32.totalorder 1, %s16
    %p261 = scmp.lt.s32.totalorder %s16, 3
    %p262 = pnand %p260, %p261
    %p263 = pneg %p262
    // Predicated region
    $region9: #{hydrophobic_forward_core.4} parent=5 // pred_check
      _
    $region10: #{hydrophobic_forward_core.4} parent=5 // pred_check_branch
      %265 = sbr.rel (%p262) target = $region12
    $region11: #{hydrophobic_forward_core.4} parent=5 // pred_region
      %s266 = ssub.s32 %s16, 1
      // Predicated region
      $region13: #{hydrophobic_forward_core.4} parent=11 // pred_check
        %p267 = pneg %p77
      $region14: #{hydrophobic_forward_core.4} parent=11 // pred_check_branch
        %269 = sbr.rel (%p267) target = $region16
      $region15: #{hydrophobic_forward_core.4} parent=11 // pred_region
        _
      $region16: #{hydrophobic_forward_core.4} parent=11 // pred_fallthru
        _
      // Predicated region
      $region17: #{hydrophobic_forward_core.4} parent=11 // pred_check
        %p270 = pneg %p98
      $region18: #{hydrophobic_forward_core.4} parent=11 // pred_check_branch
        %272 = sbr.rel (%p270) target = $region20
      $region19: #{hydrophobic_forward_core.4} parent=11 // pred_region
        _
      $region20: #{hydrophobic_forward_core.4} parent=11 // pred_fallthru
        _
      // Predicated region
      $region21: #{hydrophobic_forward_core.4} parent=11 // pred_check
        %p273 = pneg %p119
      $region22: #{hydrophobic_forward_core.4} parent=11 // pred_check_branch
        %275 = sbr.rel (%p273) target = $region24
      $region23: #{hydrophobic_forward_core.4} parent=11 // pred_region
        _
      $region24: #{hydrophobic_forward_core.4} parent=11 // pred_fallthru
        _
      // Predicated region
      $region25: #{hydrophobic_forward_core.4} parent=11 // pred_check
        %p276 = pneg %p140
      $region26: #{hydrophobic_forward_core.4} parent=11 // pred_check_branch
        %278 = sbr.rel (%p276) target = $region28
      $region27: #{hydrophobic_forward_core.4} parent=11 // pred_region
        _
      $region28: #{hydrophobic_forward_core.4} parent=11 // pred_fallthru
        _
      // Predicated region
      $region29: #{hydrophobic_forward_core.4} parent=11 // pred_check
        %p279 = pneg %p161
      $region30: #{hydrophobic_forward_core.4} parent=11 // pred_check_branch
        %281 = sbr.rel (%p279) target = $region32
      $region31: #{hydrophobic_forward_core.4} parent=11 // pred_region
        _
      $region32: #{hydrophobic_forward_core.4} parent=11 // pred_fallthru
        _
      // Predicated region
      $region33: #{hydrophobic_forward_core.4} parent=11 // pred_check
        %p282 = pneg %p182
      $region34: #{hydrophobic_forward_core.4} parent=11 // pred_check_branch
        %284 = sbr.rel (%p282) target = $region36
      $region35: #{hydrophobic_forward_core.4} parent=11 // pred_region
        _
      $region36: #{hydrophobic_forward_core.4} parent=11 // pred_fallthru
        _
      // Predicated region
      $region37: #{hydrophobic_forward_core.4} parent=11 // pred_check
        %p285 = pneg %p203
      $region38: #{hydrophobic_forward_core.4} parent=11 // pred_check_branch
        %287 = sbr.rel (%p285) target = $region40
      $region39: #{hydrophobic_forward_core.4} parent=11 // pred_region
        _
      $region40: #{hydrophobic_forward_core.4} parent=11 // pred_fallthru
        _
      // Predicated region
      $region41: #{hydrophobic_forward_core.4} parent=11 // pred_check
        %p288 = pneg %p224
      $region42: #{hydrophobic_forward_core.4} parent=11 // pred_check_branch
        %290 = sbr.rel (%p288) target = $region44
      $region43: #{hydrophobic_forward_core.4} parent=11 // pred_region
        _
      $region44: #{hydrophobic_forward_core.4} parent=11 // pred_fallthru
        _
    $region12: #{hydrophobic_forward_core.4} parent=5 // pred_fallthru
      _
    %p291 = scmp.lt.s32.totalorder %s16, 2
    // Predicated region
    $region45: #{hydrophobic_forward_core.4} parent=5 // pred_check
      %p292 = pneg %p291
    $region46: #{hydrophobic_forward_core.4} parent=5 // pred_check_branch
      %294 = sbr.rel (%p292) target = $region48
    $region47: #{hydrophobic_forward_core.4} parent=5 // pred_region
      // Predicated region
      $region49: #{hydrophobic_forward_core.4} parent=47 // pred_check
        %p295 = pneg %p50
      $region50: #{hydrophobic_forward_core.4} parent=47 // pred_check_branch
        %297 = sbr.rel (%p295) target = $region52
      $region51: #{hydrophobic_forward_core.4} parent=47 // pred_region
        %p298 = scmp.lt.s32.totalorder %s23, 1
        %s299 = scalar_select %p298, %s23, 1
        %p300 = scmp.lt.s32.totalorder %s24, 0
        %s301 = scalar_select %p300, %s24, 0
        %s302 = smul.addr %s299, 4
        %s303 = sadd.s32 %s301, %s302
        %s304 = smul.addr %s303, 8
        %s305 = scalar_lea.vmem %s0, %s304
      $region52: #{hydrophobic_forward_core.4} parent=47 // pred_fallthru
        _
    $region48: #{hydrophobic_forward_core.4} parent=5 // pred_fallthru
      _
    %p306 = scmp.le.s32.totalorder 1, %s16
    %p307 = scmp.lt.s32.totalorder %s16, 3
    %p308 = pnand %p306, %p307
    %p309 = pneg %p308
    // Predicated region
    $region53: #{hydrophobic_forward_core.4} parent=5 // pred_check
      _
    $region54: #{hydrophobic_forward_core.4} parent=5 // pred_check_branch
      %311 = sbr.rel (%p308) target = $region56
    $region55: #{hydrophobic_forward_core.4} parent=5 // pred_region
      %s312 = ssub.s32 %s16, 1
      %p313 = scmp.lt.s32.totalorder %s25, 1
      %s314 = scalar_select %p313, %s25, 1
      %p315 = scmp.lt.s32.totalorder %s26, 0
      %s316 = scalar_select %p315, %s26, 0
      %s317 = smul.addr %s314, 4
      %s318 = sadd.s32 %s316, %s317
      %s319 = smul.addr %s318, 8
      %s320 = scalar_lea.vmem %s0, %s319
      %p321 = pneg %p56
      %p322 = pneg %p53
      %p323 = pneg %p77
      %p324 = pneg %p74
      %p325 = pneg %p98
      %p326 = pneg %p95
      %p327 = pneg %p119
      %p328 = pneg %p116
      %p329 = pneg %p140
      %p330 = pneg %p137
      %p331 = pneg %p161
      %p332 = pneg %p158
      %p333 = pneg %p182
      %p334 = pneg %p179
      %p335 = pneg %p203
      %p336 = pneg %p200
      %p337 = pneg %p224
      %p338 = pneg %p221
      %p339 = pneg %p252
      %p340 = pneg %p249
      %p341 = scmp.lt.s32.totalorder %s25, 1
      %s342 = scalar_select %p341, %s25, 1
      %p343 = scmp.lt.s32.totalorder %s26, 0
      %s344 = scalar_select %p343, %s26, 0
      %s345 = sadd.s32 %s344, %s342
      %s346 = scalar_lea.vmem %s9, %s345
      %p347 = scmp.lt.s32.totalorder %s25, 1
      %s348 = scalar_select %p347, %s25, 1
      %p349 = scmp.lt.s32.totalorder %s26, 0
      %s350 = scalar_select %p349, %s26, 0
      %s351 = smul.addr %s348, 4
      %s352 = sadd.s32 %s350, %s351
      %s353 = smul.addr %s352, 8
      %s354 = scalar_lea.vmem %s0, %s353
      %p355 = scmp.lt.s32.totalorder %s25, 1
      %s356 = scalar_select %p355, %s25, 1
      %p357 = scmp.lt.s32.totalorder %s26, 0
      %s358 = scalar_select %p357, %s26, 0
      %s359 = sadd.s32 %s358, %s356
      %s360 = scalar_lea.vmem %s9, %s359
      %v361 = vld [vmem:[%s1] sm:$0xff]
      %v362 = vld [vmem:[%s1 + $0x8] sm:$0xff]
      %v363 = vld [vmem:[%s1 + $0x10] sm:$0xff]
      %v364 = vld [vmem:[%s1 + $0x18] sm:$0xff]
      %v365 = vld [vmem:[%s354] sm:$0xff]
      %v366 = vld [vmem:[%s354 + $0x8] sm:$0xff]
      %v367 = vld [vmem:[%s354 + $0x10] sm:$0xff]
      %v368 = vld [vmem:[%s354 + $0x18] sm:$0xff]
      %v369 = vld [vmem:[%s2] sm:$0xff]
      %v370 = vld [vmem:[%s2 + $0x8] sm:$0xff]
      %v371 = vld [vmem:[%s2 + $0x10] sm:$0xff]
      %v372 = vld [vmem:[%s2 + $0x18] sm:$0xff]
      %374 = vset.pattern.permute.xlu0 0
      %375 = vperm.xlu0 %374, %v369
      %v376 = vpop.permute.xlu0 %375
      %379 = vset.pattern.permute.xlu0 0
      %380 = vperm.xlu0 %379, %v370
      %v381 = vpop.permute.xlu0 %380
      %384 = vset.pattern.permute.xlu0 0
      %385 = vperm.xlu0 %384, %v371
      %v386 = vpop.permute.xlu0 %385
      %389 = vset.pattern.permute.xlu0 0
      %390 = vperm.xlu0 %389, %v372
      %v391 = vpop.permute.xlu0 %390
      %vm393 = vcmask 261120
      %v395 = vsel %vm393, %v361, 0
      %v398 = vsel %vm393, %v362, 0
      %v401 = vsel %vm393, %v363, 0
      %v404 = vsel %vm393, %v364, 0
      %406 = vmatprep.subr.mxu0 0.0
      %407 = vmatpush1.msra.mxu0 0.0
      %408 = vmatprep.subr.mxu0 0.0
      %409 = vmatpush1.msra.mxu0 0.0
      %410 = vmatprep.subr.mxu0 0.0
      %411 = vmatpush1.msra.mxu0 0.0
      %412 = vmatprep.subr.mxu0 0.0
      %413 = vmatpush1.msra.mxu0 0.0
      %414 = vmatprep.subr.mxu0 0.0
      %415 = vmatpush1.msra.mxu0 0.0
      %416 = vmatprep.subr.mxu0 0.0
      %417 = vmatpush1.msra.mxu0 0.0
      %418 = vmatprep.subr.mxu0 0.0
      %419 = vmatpush1.msra.mxu0 0.0
      %420 = vmatprep.subr.mxu0 0.0
      %421 = vmatpush1.msra.mxu0 0.0
      %422 = vmatprep.subr.mxu0 0.0
      %423 = vmatpush1.msra.mxu0 0.0
      %424 = vmatprep.subr.mxu0 0.0
      %425 = vmatpush1.msra.mxu0 0.0
      %426 = vmatprep.subr.mxu0 0.0
      %427 = vmatpush1.msra.mxu0 0.0
      %428 = vmatprep.subr.mxu0 0.0
      %429 = vmatpush1.msra.mxu0 0.0
      %430 = vmatprep.subr.mxu0 0.0
      %431 = vmatpush1.msra.mxu0 %v368
      %432 = vmatprep.subr.mxu0 0.0
      %433 = vmatpush1.msra.mxu0 %v367
      %434 = vmatprep.subr.mxu0 0.0
      %435 = vmatpush1.msra.mxu0 %v366
      %436 = vmatprep.subr.mxu0 0.0
      %437 = vmatpush1.msra.mxu0 %v365
      %438 = vmatprep.subr.mxu0 0.0
      %439 = vmatpush2.msra.mxu0 0.0
      %440 = vmatprep.subr.mxu0 0.0
      %441 = vmatpush2.msra.mxu0 0.0
      %442 = vmatprep.subr.mxu0 0.0
      %443 = vmatpush2.msra.mxu0 0.0
      %444 = vmatprep.subr.mxu0 0.0
      %445 = vmatpush2.msra.mxu0 0.0
      %446 = vmatprep.subr.mxu0 0.0
      %447 = vmatpush2.msra.mxu0 0.0
      %448 = vmatprep.subr.mxu0 0.0
      %449 = vmatpush2.msra.mxu0 0.0
      %450 = vmatprep.subr.mxu0 0.0
      %451 = vmatpush2.msra.mxu0 0.0
      %452 = vmatprep.subr.mxu0 0.0
      %453 = vmatpush2.msra.mxu0 0.0
      %454 = vmatprep.subr.mxu0 0.0
      %455 = vmatpush2.msra.mxu0 0.0
      %456 = vmatprep.subr.mxu0 0.0
      %457 = vmatpush2.msra.mxu0 0.0
      %458 = vmatprep.subr.mxu0 0.0
      %459 = vmatpush2.msra.mxu0 0.0
      %460 = vmatprep.subr.mxu0 0.0
      %461 = vmatpush2.msra.mxu0 0.0
      %462 = vmatprep.subr.mxu0 0.0
      %463 = vmatpush2.msra.mxu0 0.0
      %464 = vmatprep.subr.mxu0 0.0
      %465 = vmatpush2.msra.mxu0 0.0
      %466 = vmatprep.subr.mxu0 0.0
      %467 = vmatpush2.msra.mxu0 0.0
      %468 = vmatprep.subr.mxu0 0.0
      %469 = vmatpush2.msra.mxu0 0.0
      %470 = vmatprep.mubr.f32.mxu0 0.0
      %471 = vmatmul.mubr.f32.gmra.mxu0 %v395
      %v472 = vpop.f32.mrf.mxu0
      %v473 = vadd.f32 %v376, %v472
      %v474 = vpop.f32.mrf.mxu0
      %475 = vmatprep.mubr.f32.mxu0 0.0
      %476 = vmatmul.mubr.f32.gmra.mxu0 %v398
      %v477 = vpop.f32.mrf.mxu0
      %v478 = vadd.f32 %v381, %v477
      %v479 = vpop.f32.mrf.mxu0
      %480 = vmatprep.mubr.f32.mxu0 0.0
      %481 = vmatmul.mubr.f32.gmra.mxu0 %v401
      %v482 = vpop.f32.mrf.mxu0
      %v483 = vadd.f32 %v386, %v482
      %v484 = vpop.f32.mrf.mxu0
      %485 = vmatprep.mubr.f32.mxu0 0.0
      %486 = vmatmul.mubr.f32.gmra.mxu0 %v404
      %v487 = vpop.f32.mrf.mxu0
      %v488 = vadd.f32 %v391, %v487
      %v489 = vpop.f32.mrf.mxu0
      %490 = vdwg.mxu0
      %v491 = vmax.f32 %v473, 0.0
      %v492 = vmax.f32 %v478, 0.0
      %v493 = vmax.f32 %v483, 0.0
      %v494 = vmax.f32 %v488, 0.0
      %v495 = vld [vmem:[%s3] sm:$0xff]
      %v496 = vld [vmem:[%s3 + $0x8] sm:$0xff]
      %v497 = vld [vmem:[%s3 + $0x10] sm:$0xff]
      %v498 = vld [vmem:[%s3 + $0x18] sm:$0xff]
      %500 = vset.pattern.permute.xlu0 0
      %501 = vperm.xlu0 %500, %v495
      %v502 = vpop.permute.xlu0 %501
      %505 = vset.pattern.permute.xlu0 0
      %506 = vperm.xlu0 %505, %v496
      %v507 = vpop.permute.xlu0 %506
      %510 = vset.pattern.permute.xlu0 0
      %511 = vperm.xlu0 %510, %v497
      %v512 = vpop.permute.xlu0 %511
      %515 = vset.pattern.permute.xlu0 0
      %516 = vperm.xlu0 %515, %v498
      %v517 = vpop.permute.xlu0 %516
      %v519 = vmul.f32 %v491, %v502
      %v520 = vmul.f32 %v492, %v507
      %v521 = vmul.f32 %v493, %v512
      %v522 = vmul.f32 %v494, %v517
      %v523 = vld [vmem:[%s4] sm:$0xff]
      %v524 = vld [vmem:[%s4 + $0x8] sm:$0xff]
      %v525 = vld [vmem:[%s4 + $0x10] sm:$0xff]
      %v526 = vld [vmem:[%s4 + $0x18] sm:$0xff]
      %528 = vset.pattern.permute.xlu0 0
      %529 = vperm.xlu0 %528, %v523
      %v530 = vpop.permute.xlu0 %529
      %533 = vset.pattern.permute.xlu0 0
      %534 = vperm.xlu0 %533, %v524
      %v535 = vpop.permute.xlu0 %534
      %538 = vset.pattern.permute.xlu0 0
      %539 = vperm.xlu0 %538, %v525
      %v540 = vpop.permute.xlu0 %539
      %543 = vset.pattern.permute.xlu0 0
      %544 = vperm.xlu0 %543, %v526
      %v545 = vpop.permute.xlu0 %544
      %v547 = vadd.f32 %v519, %v530
      %v548 = vadd.f32 %v520, %v535
      %v549 = vadd.f32 %v521, %v540
      %v550 = vadd.f32 %v522, %v545
      %v551 = vld [vmem:[%s5] sm:$0xff]
      %v552 = vld [vmem:[%s5 + $0x8] sm:$0xff]
      %v553 = vld [vmem:[%s6] sm:$0xff]
      %v554 = vld [vmem:[%s6 + $0x8] sm:$0xff]
      %556 = vset.pattern.permute.xlu0 0
      %557 = vperm.xlu0 %556, %v553
      %v558 = vpop.permute.xlu0 %557
      %561 = vset.pattern.permute.xlu0 0
      %562 = vperm.xlu0 %561, %v554
      %v563 = vpop.permute.xlu0 %562
      %v566 = vsel %vm393, %v551, 0
      %v569 = vsel %vm393, %v552, 0
      %571 = vmatprep.subr.mxu0 0.0
      %572 = vmatpush1.msra.mxu0 0.0
      %573 = vmatprep.subr.mxu0 0.0
      %574 = vmatpush1.msra.mxu0 0.0
      %575 = vmatprep.subr.mxu0 0.0
      %576 = vmatpush1.msra.mxu0 0.0
      %577 = vmatprep.subr.mxu0 0.0
      %578 = vmatpush1.msra.mxu0 0.0
      %579 = vmatprep.subr.mxu0 0.0
      %580 = vmatpush1.msra.mxu0 0.0
      %581 = vmatprep.subr.mxu0 0.0
      %582 = vmatpush1.msra.mxu0 0.0
      %583 = vmatprep.subr.mxu0 0.0
      %584 = vmatpush1.msra.mxu0 0.0
      %585 = vmatprep.subr.mxu0 0.0
      %586 = vmatpush1.msra.mxu0 0.0
      %587 = vmatprep.subr.mxu0 0.0
      %588 = vmatpush1.msra.mxu0 0.0
      %589 = vmatprep.subr.mxu0 0.0
      %590 = vmatpush1.msra.mxu0 0.0
      %591 = vmatprep.subr.mxu0 0.0
      %592 = vmatpush1.msra.mxu0 0.0
      %593 = vmatprep.subr.mxu0 0.0
      %594 = vmatpush1.msra.mxu0 0.0
      %595 = vmatprep.subr.mxu0 0.0
      %596 = vmatpush1.msra.mxu0 %v550
      %597 = vmatprep.subr.mxu0 0.0
      %598 = vmatpush1.msra.mxu0 %v549
      %599 = vmatprep.subr.mxu0 0.0
      %600 = vmatpush1.msra.mxu0 %v548
      %601 = vmatprep.subr.mxu0 0.0
      %602 = vmatpush1.msra.mxu0 %v547
      %603 = vmatprep.subr.mxu0 0.0
      %604 = vmatpush2.msra.mxu0 0.0
      %605 = vmatprep.subr.mxu0 0.0
      %606 = vmatpush2.msra.mxu0 0.0
      %607 = vmatprep.subr.mxu0 0.0
      %608 = vmatpush2.msra.mxu0 0.0
      %609 = vmatprep.subr.mxu0 0.0
      %610 = vmatpush2.msra.mxu0 0.0
      %611 = vmatprep.subr.mxu0 0.0
      %612 = vmatpush2.msra.mxu0 0.0
      %613 = vmatprep.subr.mxu0 0.0
      %614 = vmatpush2.msra.mxu0 0.0
      %615 = vmatprep.subr.mxu0 0.0
      %616 = vmatpush2.msra.mxu0 0.0
      %617 = vmatprep.subr.mxu0 0.0
      %618 = vmatpush2.msra.mxu0 0.0
      %619 = vmatprep.subr.mxu0 0.0
      %620 = vmatpush2.msra.mxu0 0.0
      %621 = vmatprep.subr.mxu0 0.0
      %622 = vmatpush2.msra.mxu0 0.0
      %623 = vmatprep.subr.mxu0 0.0
      %624 = vmatpush2.msra.mxu0 0.0
      %625 = vmatprep.subr.mxu0 0.0
      %626 = vmatpush2.msra.mxu0 0.0
      %627 = vmatprep.subr.mxu0 0.0
      %628 = vmatpush2.msra.mxu0 0.0
      %629 = vmatprep.subr.mxu0 0.0
      %630 = vmatpush2.msra.mxu0 0.0
      %631 = vmatprep.subr.mxu0 0.0
      %632 = vmatpush2.msra.mxu0 0.0
      %633 = vmatprep.subr.mxu0 0.0
      %634 = vmatpush2.msra.mxu0 0.0
      %635 = vmatprep.mubr.f32.mxu0 0.0
      %636 = vmatmul.mubr.f32.gmra.mxu0 %v566
      %v637 = vpop.f32.mrf.mxu0
      %v638 = vadd.f32 %v558, %v637
      %v639 = vpop.f32.mrf.mxu0
      %640 = vmatprep.mubr.f32.mxu0 0.0
      %641 = vmatmul.mubr.f32.gmra.mxu0 %v569
      %v642 = vpop.f32.mrf.mxu0
      %v643 = vadd.f32 %v563, %v642
      %v644 = vpop.f32.mrf.mxu0
      %645 = vdwg.mxu0
      %v646 = vmax.f32 %v638, 0.0
      %v647 = vmax.f32 %v643, 0.0
      %v648 = vld [vmem:[%s7] sm:$0xff]
      %v649 = vld [vmem:[%s7 + $0x8] sm:$0xff]
      %651 = vset.pattern.permute.xlu0 0
      %652 = vperm.xlu0 %651, %v648
      %v653 = vpop.permute.xlu0 %652
      %656 = vset.pattern.permute.xlu0 0
      %657 = vperm.xlu0 %656, %v649
      %v658 = vpop.permute.xlu0 %657
      %v660 = vmul.f32 %v646, %v653
      %v661 = vmul.f32 %v647, %v658
      %v662 = vadd.f32 %v660, %v661
      %v663 = vrot.slane %v662, 4
      %v664 = vadd.f32 %v662, %v663
      %v665 = vrot.slane %v664, 2
      %v666 = vadd.f32 %v664, %v665
      %v667 = vrot.slane %v666, 1
      %v668 = vadd.f32 %v666, %v667
      %s669 = sld [smem:[#allocation2]]
      %v670 = vstv %s669
      %v671 = vadd.f32 %v668, %v670
      %v672 = vtanh.pop %v671
      %673 = vst [vmem:[%s360] sm:$0x1] %v672
      %p674 = scmp.lt.s32.totalorder %s25, 1
      %s675 = scalar_select %p674, %s25, 1
      %p676 = scmp.lt.s32.totalorder %s26, 0
      %s677 = scalar_select %p676, %s26, 0
      %s678 = sadd.s32 %s677, %s675
      %s679 = scalar_lea.vmem %s9, %s678
      // Predicated region
      $region57: #{hydrophobic_forward_core.4} parent=55 // pred_check
        %p680 = pneg %p249
      $region58: #{hydrophobic_forward_core.4} parent=55 // pred_check_branch
        %682 = sbr.rel (%p680) target = $region60
      $region59: #{hydrophobic_forward_core.4} parent=55 // pred_region
        _
      $region60: #{hydrophobic_forward_core.4} parent=55 // pred_fallthru
        _
    $region56: #{hydrophobic_forward_core.4} parent=5 // pred_fallthru
      _
    %p683 = scmp.le.s32.totalorder 2, %s16
    // Predicated region
    $region61: #{hydrophobic_forward_core.4} parent=5 // pred_check
      %p684 = pneg %p683
    $region62: #{hydrophobic_forward_core.4} parent=5 // pred_check_branch
      %686 = sbr.rel (%p684) target = $region64
    $region63: #{hydrophobic_forward_core.4} parent=5 // pred_region
      %s687 = ssub.s32 %s16, 2
      // Predicated region
      $region65: #{hydrophobic_forward_core.4} parent=63 // pred_check
        %p688 = pneg %p255
      $region66: #{hydrophobic_forward_core.4} parent=63 // pred_check_branch
        %690 = sbr.rel (%p688) target = $region68
      $region67: #{hydrophobic_forward_core.4} parent=63 // pred_region
        %p691 = scmp.lt.s32.totalorder %s27, 1
        %s692 = scalar_select %p691, %s27, 1
        %p693 = scmp.lt.s32.totalorder %s28, 0
        %s694 = scalar_select %p693, %s28, 0
        %s695 = sadd.s32 %s694, %s692
        %s696 = scalar_lea.vmem %s9, %s695
      $region68: #{hydrophobic_forward_core.4} parent=63 // pred_fallthru
        _
    $region64: #{hydrophobic_forward_core.4} parent=5 // pred_fallthru
      _
  $region6: #{hydrophobic_forward_core.4} parent=0 // loop_footer
    %s20 = sadd.s32 1, %s16
  $region7: #{hydrophobic_forward_core.4} parent=0 // loop_footer_branch
    %15 = sbr.rel target = $region3
  $region8: #{hydrophobic_forward_core.4} parent=0 // loop_exit
    _

// kernel: hydrophobic_forward_core.5
$region0: #{hydrophobic_forward_core.5}
  #allocation0 [shape = 'u32[]', space=smem, size = 0x4, offset = 0x4, fixed_abs, tag = 'smem constant byte address 0x4 - core index']
  #allocation1 [shape = 'u32[144,128]{1,0:T(1,128)}', space=vmem, size = 0x12000, scoped, tag = 'internal scratch']
  #allocation2 [shape = 'f32[1]{0:T(128)S(6)}', space=smem, size = 0x200, scoped, tag = 'scoped memory for hydrophobic_forward_core.5']
  %s0 = inlined_call_operand.vmem [shape: f32[2,1,128], index: 0, kind: input, shape index: {}]
  %s1 = inlined_call_operand.vmem [shape: f32[16,5], index: 1, kind: input, shape index: {}]
  %s2 = inlined_call_operand.vmem [shape: f32[16,1], index: 2, kind: input, shape index: {}]
  %s3 = inlined_call_operand.vmem [shape: f32[3,8,16], index: 3, kind: input, shape index: {}]
  %s4 = inlined_call_operand.vmem [shape: f32[8,1], index: 4, kind: input, shape index: {}]
  %s5 = inlined_call_operand.vmem [shape: f32[8,3], index: 5, kind: input, shape index: {}]
  %s6 = inlined_call_operand.<no memory space> [shape: f32[1], index: 6, kind: input, shape index: {}]
  %s7 = inlined_call_operand.vmem [shape: f32[2,1,128], index: 7, kind: output, shape index: {}]
  %s8 = sld [smem:[#allocation0]]
  $region61: #{hydrophobic_forward_core.5} parent=0
    _
  %s10 = ssub.s32 1, %s8
  %s11 = scalar_select 0, %s10, %s8
  %12 = sst [smem:[#allocation2]] %s6
  loop: start=0, step=1, limit=4
  $region2: #{hydrophobic_forward_core.5} parent=0 // loop_pre_header
    _
  $region3: #{hydrophobic_forward_core.5} parent=0 // loop_header
    %s14 = sphi 0, %s18
    %p15 = scmp.ge.s32.totalorder %s14, 4
    %s24 = sphi 0, %s26
    %s27 = sphi 0, %s24
    %s28 = sphi 0, %s27
    %s44 = sphi 0, %s28
    %s48 = sphi 0, %s48
    %s50 = sphi 0, %s48
    %s51 = sphi 0, %s50
    %s65 = sphi 0, %s51
    %s69 = sphi 0, %s69
    %s71 = sphi 0, %s69
    %s72 = sphi 0, %s71
    %s86 = sphi 0, %s72
    %s90 = sphi 0, %s90
    %s92 = sphi 0, %s90
    %s93 = sphi 0, %s92
    %s107 = sphi 0, %s93
    %s111 = sphi 0, %s111
    %s113 = sphi 0, %s111
    %s114 = sphi 0, %s113
    %s128 = sphi 0, %s114
    %s132 = sphi 0, %s132
    %s134 = sphi 0, %s132
    %s135 = sphi 0, %s134
    %s149 = sphi 0, %s135
    %s153 = sphi 0, %s153
    %s155 = sphi 0, %s153
    %s156 = sphi 0, %s155
    %s170 = sphi 0, %s156
    %s176 = sphi 0, %s178
    %s179 = sphi 0, %s176
    %s180 = sphi 0, %s179
    %s196 = sphi 0, %s180
  $region4: #{hydrophobic_forward_core.5} parent=0 // loop_header_branch
    %17 = sbr.rel (%p15) target = $region8
  $region5: #{hydrophobic_forward_core.5} parent=0 // loop_body
    %s19 = ssub.s32 %s14, 1
    %s20 = ssub.s32 %s14, 2
    %s21 = sadd.s32 %s14, 1
    %s22 = ssub.s32 %s14, %s21
    %p23 = scmp.eq.s32.totalorder %s22, 0
    %s25 = sadd.s32 %s24, 1
    %s26 = scalar_select %p23, %s24, %s25
    %p29 = pneg %p23
    %p30 = scmp.eq.s32.totalorder %s14, 1
    %p31 = por %p29, %p30
    %p32 = scmp.ne.s32.totalorder %s24, %s27
    %p33 = scmp.eq.s32.totalorder %s14, 0
    %p34 = por %p32, %p33
    %p35 = scmp.ne.s32.totalorder %s24, %s27
    %p36 = scmp.eq.s32.totalorder %s19, 1
    %p37 = por %p35, %p36
    %p38 = scmp.ne.s32.totalorder %s27, %s28
    %p39 = scmp.eq.s32.totalorder %s19, 0
    %p40 = por %p38, %p39
    %p41 = scmp.ne.s32.totalorder %s27, %s28
    %p42 = scmp.eq.s32.totalorder %s20, 1
    %p43 = por %p41, %p42
    %p45 = scmp.ne.s32.totalorder %s28, %s44
    %p46 = scmp.eq.s32.totalorder %s20, 0
    %p47 = por %p45, %p46
    %s49 = sadd.s32 %s48, 1
    %p52 = scmp.eq.s32.totalorder %s14, 1
    %p53 = scmp.ne.s32.totalorder %s48, %s50
    %p54 = scmp.eq.s32.totalorder %s14, 0
    %p55 = por %p53, %p54
    %p56 = scmp.ne.s32.totalorder %s48, %s50
    %p57 = scmp.eq.s32.totalorder %s19, 1
    %p58 = por %p56, %p57
    %p59 = scmp.ne.s32.totalorder %s50, %s51
    %p60 = scmp.eq.s32.totalorder %s19, 0
    %p61 = por %p59, %p60
    %p62 = scmp.ne.s32.totalorder %s50, %s51
    %p63 = scmp.eq.s32.totalorder %s20, 1
    %p64 = por %p62, %p63
    %p66 = scmp.ne.s32.totalorder %s51, %s65
    %p67 = scmp.eq.s32.totalorder %s20, 0
    %p68 = por %p66, %p67
    %s70 = sadd.s32 %s69, 1
    %p73 = scmp.eq.s32.totalorder %s14, 1
    %p74 = scmp.ne.s32.totalorder %s69, %s71
    %p75 = scmp.eq.s32.totalorder %s14, 0
    %p76 = por %p74, %p75
    %p77 = scmp.ne.s32.totalorder %s69, %s71
    %p78 = scmp.eq.s32.totalorder %s19, 1
    %p79 = por %p77, %p78
    %p80 = scmp.ne.s32.totalorder %s71, %s72
    %p81 = scmp.eq.s32.totalorder %s19, 0
    %p82 = por %p80, %p81
    %p83 = scmp.ne.s32.totalorder %s71, %s72
    %p84 = scmp.eq.s32.totalorder %s20, 1
    %p85 = por %p83, %p84
    %p87 = scmp.ne.s32.totalorder %s72, %s86
    %p88 = scmp.eq.s32.totalorder %s20, 0
    %p89 = por %p87, %p88
    %s91 = sadd.s32 %s90, 1
    %p94 = scmp.eq.s32.totalorder %s14, 1
    %p95 = scmp.ne.s32.totalorder %s90, %s92
    %p96 = scmp.eq.s32.totalorder %s14, 0
    %p97 = por %p95, %p96
    %p98 = scmp.ne.s32.totalorder %s90, %s92
    %p99 = scmp.eq.s32.totalorder %s19, 1
    %p100 = por %p98, %p99
    %p101 = scmp.ne.s32.totalorder %s92, %s93
    %p102 = scmp.eq.s32.totalorder %s19, 0
    %p103 = por %p101, %p102
    %p104 = scmp.ne.s32.totalorder %s92, %s93
    %p105 = scmp.eq.s32.totalorder %s20, 1
    %p106 = por %p104, %p105
    %p108 = scmp.ne.s32.totalorder %s93, %s107
    %p109 = scmp.eq.s32.totalorder %s20, 0
    %p110 = por %p108, %p109
    %s112 = sadd.s32 %s111, 1
    %p115 = scmp.eq.s32.totalorder %s14, 1
    %p116 = scmp.ne.s32.totalorder %s111, %s113
    %p117 = scmp.eq.s32.totalorder %s14, 0
    %p118 = por %p116, %p117
    %p119 = scmp.ne.s32.totalorder %s111, %s113
    %p120 = scmp.eq.s32.totalorder %s19, 1
    %p121 = por %p119, %p120
    %p122 = scmp.ne.s32.totalorder %s113, %s114
    %p123 = scmp.eq.s32.totalorder %s19, 0
    %p124 = por %p122, %p123
    %p125 = scmp.ne.s32.totalorder %s113, %s114
    %p126 = scmp.eq.s32.totalorder %s20, 1
    %p127 = por %p125, %p126
    %p129 = scmp.ne.s32.totalorder %s114, %s128
    %p130 = scmp.eq.s32.totalorder %s20, 0
    %p131 = por %p129, %p130
    %s133 = sadd.s32 %s132, 1
    %p136 = scmp.eq.s32.totalorder %s14, 1
    %p137 = scmp.ne.s32.totalorder %s132, %s134
    %p138 = scmp.eq.s32.totalorder %s14, 0
    %p139 = por %p137, %p138
    %p140 = scmp.ne.s32.totalorder %s132, %s134
    %p141 = scmp.eq.s32.totalorder %s19, 1
    %p142 = por %p140, %p141
    %p143 = scmp.ne.s32.totalorder %s134, %s135
    %p144 = scmp.eq.s32.totalorder %s19, 0
    %p145 = por %p143, %p144
    %p146 = scmp.ne.s32.totalorder %s134, %s135
    %p147 = scmp.eq.s32.totalorder %s20, 1
    %p148 = por %p146, %p147
    %p150 = scmp.ne.s32.totalorder %s135, %s149
    %p151 = scmp.eq.s32.totalorder %s20, 0
    %p152 = por %p150, %p151
    %s154 = sadd.s32 %s153, 1
    %p157 = scmp.eq.s32.totalorder %s14, 1
    %p158 = scmp.ne.s32.totalorder %s153, %s155
    %p159 = scmp.eq.s32.totalorder %s14, 0
    %p160 = por %p158, %p159
    %p161 = scmp.ne.s32.totalorder %s153, %s155
    %p162 = scmp.eq.s32.totalorder %s19, 1
    %p163 = por %p161, %p162
    %p164 = scmp.ne.s32.totalorder %s155, %s156
    %p165 = scmp.eq.s32.totalorder %s19, 0
    %p166 = por %p164, %p165
    %p167 = scmp.ne.s32.totalorder %s155, %s156
    %p168 = scmp.eq.s32.totalorder %s20, 1
    %p169 = por %p167, %p168
    %p171 = scmp.ne.s32.totalorder %s156, %s170
    %p172 = scmp.eq.s32.totalorder %s20, 0
    %p173 = por %p171, %p172
    %s174 = ssub.s32 %s14, %s21
    %p175 = scmp.eq.s32.totalorder %s174, 0
    %s177 = sadd.s32 %s176, 1
    %s178 = scalar_select %p175, %s176, %s177
    %p181 = pneg %p175
    %p182 = scmp.eq.s32.totalorder %s14, 1
    %p183 = por %p181, %p182
    %p184 = scmp.ne.s32.totalorder %s176, %s179
    %p185 = scmp.eq.s32.totalorder %s14, 0
    %p186 = por %p184, %p185
    %p187 = scmp.ne.s32.totalorder %s176, %s179
    %p188 = scmp.eq.s32.totalorder %s19, 1
    %p189 = por %p187, %p188
    %p190 = scmp.ne.s32.totalorder %s179, %s180
    %p191 = scmp.eq.s32.totalorder %s19, 0
    %p192 = por %p190, %p191
    %p193 = scmp.ne.s32.totalorder %s179, %s180
    %p194 = scmp.eq.s32.totalorder %s20, 1
    %p195 = por %p193, %p194
    %p197 = scmp.ne.s32.totalorder %s180, %s196
    %p198 = scmp.eq.s32.totalorder %s20, 0
    %p199 = por %p197, %p198
    %p200 = scmp.le.s32.totalorder 1, %s14
    %p201 = scmp.lt.s32.totalorder %s14, 3
    %p202 = pnand %p200, %p201
    %p203 = pneg %p202
    // Predicated region
    $region9: #{hydrophobic_forward_core.5} parent=5 // pred_check
      _
    $region10: #{hydrophobic_forward_core.5} parent=5 // pred_check_branch
      %205 = sbr.rel (%p202) target = $region12
    $region11: #{hydrophobic_forward_core.5} parent=5 // pred_region
      %s206 = ssub.s32 %s14, 1
      // Predicated region
      $region13: #{hydrophobic_forward_core.5} parent=11 // pred_check
        %p207 = pneg %p61
      $region14: #{hydrophobic_forward_core.5} parent=11 // pred_check_branch
        %209 = sbr.rel (%p207) target = $region16
      $region15: #{hydrophobic_forward_core.5} parent=11 // pred_region
        _
      $region16: #{hydrophobic_forward_core.5} parent=11 // pred_fallthru
        _
      // Predicated region
      $region17: #{hydrophobic_forward_core.5} parent=11 // pred_check
        %p210 = pneg %p82
      $region18: #{hydrophobic_forward_core.5} parent=11 // pred_check_branch
        %212 = sbr.rel (%p210) target = $region20
      $region19: #{hydrophobic_forward_core.5} parent=11 // pred_region
        _
      $region20: #{hydrophobic_forward_core.5} parent=11 // pred_fallthru
        _
      // Predicated region
      $region21: #{hydrophobic_forward_core.5} parent=11 // pred_check
        %p213 = pneg %p103
      $region22: #{hydrophobic_forward_core.5} parent=11 // pred_check_branch
        %215 = sbr.rel (%p213) target = $region24
      $region23: #{hydrophobic_forward_core.5} parent=11 // pred_region
        _
      $region24: #{hydrophobic_forward_core.5} parent=11 // pred_fallthru
        _
      // Predicated region
      $region25: #{hydrophobic_forward_core.5} parent=11 // pred_check
        %p216 = pneg %p124
      $region26: #{hydrophobic_forward_core.5} parent=11 // pred_check_branch
        %218 = sbr.rel (%p216) target = $region28
      $region27: #{hydrophobic_forward_core.5} parent=11 // pred_region
        _
      $region28: #{hydrophobic_forward_core.5} parent=11 // pred_fallthru
        _
      // Predicated region
      $region29: #{hydrophobic_forward_core.5} parent=11 // pred_check
        %p219 = pneg %p145
      $region30: #{hydrophobic_forward_core.5} parent=11 // pred_check_branch
        %221 = sbr.rel (%p219) target = $region32
      $region31: #{hydrophobic_forward_core.5} parent=11 // pred_region
        _
      $region32: #{hydrophobic_forward_core.5} parent=11 // pred_fallthru
        _
      // Predicated region
      $region33: #{hydrophobic_forward_core.5} parent=11 // pred_check
        %p222 = pneg %p166
      $region34: #{hydrophobic_forward_core.5} parent=11 // pred_check_branch
        %224 = sbr.rel (%p222) target = $region36
      $region35: #{hydrophobic_forward_core.5} parent=11 // pred_region
        _
      $region36: #{hydrophobic_forward_core.5} parent=11 // pred_fallthru
        _
    $region12: #{hydrophobic_forward_core.5} parent=5 // pred_fallthru
      _
    %p225 = scmp.lt.s32.totalorder %s14, 2
    // Predicated region
    $region37: #{hydrophobic_forward_core.5} parent=5 // pred_check
      %p226 = pneg %p225
    $region38: #{hydrophobic_forward_core.5} parent=5 // pred_check_branch
      %228 = sbr.rel (%p226) target = $region40
    $region39: #{hydrophobic_forward_core.5} parent=5 // pred_region
      // Predicated region
      $region41: #{hydrophobic_forward_core.5} parent=39 // pred_check
        %p229 = pneg %p34
      $region42: #{hydrophobic_forward_core.5} parent=39 // pred_check_branch
        %231 = sbr.rel (%p229) target = $region44
      $region43: #{hydrophobic_forward_core.5} parent=39 // pred_region
        %p232 = scmp.lt.s32.totalorder %s14, 1
        %s233 = scalar_select %p232, %s14, 1
        %s234 = scalar_lea.vmem %s0, %s233
      $region44: #{hydrophobic_forward_core.5} parent=39 // pred_fallthru
        _
    $region40: #{hydrophobic_forward_core.5} parent=5 // pred_fallthru
      _
    %p235 = scmp.le.s32.totalorder 1, %s14
    %p236 = scmp.lt.s32.totalorder %s14, 3
    %p237 = pnand %p235, %p236
    %p238 = pneg %p237
    // Predicated region
    $region45: #{hydrophobic_forward_core.5} parent=5 // pred_check
      _
    $region46: #{hydrophobic_forward_core.5} parent=5 // pred_check_branch
      %240 = sbr.rel (%p237) target = $region48
    $region47: #{hydrophobic_forward_core.5} parent=5 // pred_region
      %s241 = ssub.s32 %s14, 1
      %p242 = scmp.lt.s32.totalorder %s19, 1
      %s243 = scalar_select %p242, %s19, 1
      %s244 = scalar_lea.vmem %s0, %s243
      %p245 = pneg %p40
      %p246 = pneg %p37
      %p247 = pneg %p61
      %p248 = pneg %p58
      %p249 = pneg %p82
      %p250 = pneg %p79
      %p251 = pneg %p103
      %p252 = pneg %p100
      %p253 = pneg %p124
      %p254 = pneg %p121
      %p255 = pneg %p145
      %p256 = pneg %p142
      %p257 = pneg %p166
      %p258 = pneg %p163
      %p259 = pneg %p192
      %p260 = pneg %p189
      %p261 = scmp.lt.s32.totalorder %s19, 1
      %s262 = scalar_select %p261, %s19, 1
      %s263 = scalar_lea.vmem %s7, %s262
      %p264 = scmp.lt.s32.totalorder %s19, 1
      %s265 = scalar_select %p264, %s19, 1
      %s266 = scalar_lea.vmem %s0, %s265
      %p267 = scmp.lt.s32.totalorder %s19, 1
      %s268 = scalar_select %p267, %s19, 1
      %s269 = scalar_lea.vmem %s7, %s268
      %v270 = vld [vmem:[%s266] sm:$0x1]
      %v271 = vlaneseq
      %v272 = vand.u32 %v271, 127
      %v273 = vadd.s32 %v272, 4294967294
      %vm274 = vcmp.ge.s32.totalorder %v273, 0
      %vm275 = vcmp.lt.s32.totalorder %v273, 8
      %vm276 = vmand %vm274, %vm275
      %v277 = vadd.s32 %v272, 4294967295
      %vm278 = vcmp.ge.s32.totalorder %v277, 0
      %vm279 = vcmp.lt.s32.totalorder %v277, 8
      %vm280 = vmand %vm278, %vm279
      %vm281 = vcmp.ge.s32.totalorder %v272, 0
      %vm282 = vcmp.lt.s32.totalorder %v272, 8
      %vm283 = vmand %vm281, %vm282
      %v284 = vadd.s32 %v272, 1
      %vm285 = vcmp.ge.s32.totalorder %v284, 0
      %vm286 = vcmp.lt.s32.totalorder %v284, 8
      %vm287 = vmand %vm285, %vm286
      %v288 = vadd.s32 %v272, 2
      %vm289 = vcmp.ge.s32.totalorder %v288, 0
      %vm290 = vcmp.lt.s32.totalorder %v288, 8
      %vm291 = vmand %vm289, %vm290
      %v292 = vld [vmem:[%s1] sm:$0xff]
      %v293 = vld [vmem:[%s1 + $0x8] sm:$0xff]
      %v294 = vld [vmem:[%s3] sm:$0xff]
      %v295 = vld [vmem:[%s3 + $0x8] sm:$0xff]
      %v296 = vld [vmem:[%s3 + $0x10] sm:$0xff]
      %v297 = vld [vmem:[%s5] sm:$0xff]
      %298 = vrot.lane.b32.xlu0 %v270, 2
      %v299 = vpop.permute.xlu0 %298
      %v300 = vsel %vm276, %v299, 0.0
      %302 = vset.pattern.permute.xlu0 0
      %303 = vperm.xlu0 %302, %v292
      %v304 = vpop.permute.xlu0 %303
      %307 = vset.pattern.permute.xlu0 0
      %308 = vperm.xlu0 %307, %v293
      %v309 = vpop.permute.xlu0 %308
      %v311 = vlaneseq
      %v312 = vshrl.u32 %v311, 7
      %v313 = vsub.s32 0, %v312
      %v314 = vrot.slane %v300, %v313
      %v315 = vmul.f32 %v304, %v314
      %v316 = vmul.f32 %v309, %v314
      %v317 = vadd.f32 %v315, 0.0
      %v318 = vadd.f32 %v316, 0.0
      %319 = vrot.lane.b32.xlu0 %v270, 1
      %v320 = vpop.permute.xlu0 %319
      %v321 = vsel %vm280, %v320, 0.0
      %322 = vset.pattern.permute.xlu0 1
      %323 = vperm.xlu0 %322, %v292
      %v324 = vpop.permute.xlu0 %323
      %326 = vset.pattern.permute.xlu0 1
      %327 = vperm.xlu0 %326, %v293
      %v328 = vpop.permute.xlu0 %327
      %v330 = vlaneseq
      %v331 = vshrl.u32 %v330, 7
      %v332 = vsub.s32 0, %v331
      %v333 = vrot.slane %v321, %v332
      %v334 = vmul.f32 %v324, %v333
      %v335 = vmul.f32 %v328, %v333
      %v336 = vadd.f32 %v317, %v334
      %v337 = vadd.f32 %v318, %v335
      %v338 = vsel %vm283, %v270, 0.0
      %339 = vset.pattern.permute.xlu0 2
      %340 = vperm.xlu0 %339, %v292
      %v341 = vpop.permute.xlu0 %340
      %343 = vset.pattern.permute.xlu0 2
      %344 = vperm.xlu0 %343, %v293
      %v345 = vpop.permute.xlu0 %344
      %v347 = vlaneseq
      %v348 = vshrl.u32 %v347, 7
      %v349 = vsub.s32 0, %v348
      %v350 = vrot.slane %v338, %v349
      %v351 = vmul.f32 %v341, %v350
      %v352 = vmul.f32 %v345, %v350
      %v353 = vadd.f32 %v336, %v351
      %v354 = vadd.f32 %v337, %v352
      %355 = vrot.lane.b32.xlu0 %v270, 127
      %v356 = vpop.permute.xlu0 %355
      %v357 = vsel %vm287, %v356, 0.0
      %358 = vset.pattern.permute.xlu0 3
      %359 = vperm.xlu0 %358, %v292
      %v360 = vpop.permute.xlu0 %359
      %362 = vset.pattern.permute.xlu0 3
      %363 = vperm.xlu0 %362, %v293
      %v364 = vpop.permute.xlu0 %363
      %v366 = vlaneseq
      %v367 = vshrl.u32 %v366, 7
      %v368 = vsub.s32 0, %v367
      %v369 = vrot.slane %v357, %v368
      %v370 = vmul.f32 %v360, %v369
      %v371 = vmul.f32 %v364, %v369
      %v372 = vadd.f32 %v353, %v370
      %v373 = vadd.f32 %v354, %v371
      %374 = vrot.lane.b32.xlu0 %v270, 126
      %v375 = vpop.permute.xlu0 %374
      %v376 = vsel %vm291, %v375, 0.0
      %377 = vset.pattern.permute.xlu0 4
      %378 = vperm.xlu0 %377, %v292
      %v379 = vpop.permute.xlu0 %378
      %381 = vset.pattern.permute.xlu0 4
      %382 = vperm.xlu0 %381, %v293
      %v383 = vpop.permute.xlu0 %382
      %v385 = vlaneseq
      %v386 = vshrl.u32 %v385, 7
      %v387 = vsub.s32 0, %v386
      %v388 = vrot.slane %v376, %v387
      %v389 = vmul.f32 %v379, %v388
      %v390 = vmul.f32 %v383, %v388
      %v391 = vadd.f32 %v372, %v389
      %v392 = vadd.f32 %v373, %v390
      %v393 = vld [vmem:[%s2] sm:$0xff]
      %v394 = vld [vmem:[%s2 + $0x8] sm:$0xff]
      %396 = vset.pattern.permute.xlu0 0
      %397 = vperm.xlu0 %396, %v393
      %v398 = vpop.permute.xlu0 %397
      %401 = vset.pattern.permute.xlu0 0
      %402 = vperm.xlu0 %401, %v394
      %v403 = vpop.permute.xlu0 %402
      %v405 = vadd.f32 %v391, %v398
      %v406 = vadd.f32 %v392, %v403
      %v407 = vmax.f32 %v405, 0.0
      %v408 = vmax.f32 %v406, 0.0
      %409 = vrot.lane.b32.xlu0 %v407, 1
      %v410 = vpop.permute.xlu0 %409
      %411 = vrot.lane.b32.xlu0 %v408, 1
      %v412 = vpop.permute.xlu0 %411
      %v413 = vsel %vm280, 1, 0
      %vm414 = vcmp.eq.s32.totalorder %v413, 1
      %v415 = vsel %vm414, %v410, 0.0
      %v416 = vsel %vm414, %v412, 0.0
      %v417 = vsel %vm283, 1, 0
      %vm418 = vcmp.eq.s32.totalorder %v417, 1
      %v419 = vsel %vm418, %v407, 0.0
      %v420 = vsel %vm418, %v408, 0.0
      %vm421 = vcmask 130048
      %v423 = vsel %vm421, %v295, 0
      %425 = vmatprep.subr.mxu0 0.0
      %426 = vmatpush1.msra.mxu0 0.0
      %427 = vmatprep.subr.mxu0 0.0
      %428 = vmatpush1.msra.mxu0 0.0
      %429 = vmatprep.subr.mxu0 0.0
      %430 = vmatpush1.msra.mxu0 0.0
      %431 = vmatprep.subr.mxu0 0.0
      %432 = vmatpush1.msra.mxu0 0.0
      %433 = vmatprep.subr.mxu0 0.0
      %434 = vmatpush1.msra.mxu0 0.0
      %435 = vmatprep.subr.mxu0 0.0
      %436 = vmatpush1.msra.mxu0 0.0
      %437 = vmatprep.subr.mxu0 0.0
      %438 = vmatpush1.msra.mxu0 0.0
      %439 = vmatprep.subr.mxu0 0.0
      %440 = vmatpush1.msra.mxu0 0.0
      %441 = vmatprep.subr.mxu0 0.0
      %442 = vmatpush1.msra.mxu0 0.0
      %443 = vmatprep.subr.mxu0 0.0
      %444 = vmatpush1.msra.mxu0 0.0
      %445 = vmatprep.subr.mxu0 0.0
      %446 = vmatpush1.msra.mxu0 0.0
      %447 = vmatprep.subr.mxu0 0.0
      %448 = vmatpush1.msra.mxu0 0.0
      %449 = vmatprep.subr.mxu0 0.0
      %450 = vmatpush1.msra.mxu0 0.0
      %451 = vmatprep.subr.mxu0 0.0
      %452 = vmatpush1.msra.mxu0 0.0
      %453 = vmatprep.subr.mxu0 0.0
      %454 = vmatpush1.msra.mxu0 %v420
      %455 = vmatprep.subr.mxu0 0.0
      %456 = vmatpush1.msra.mxu0 %v419
      %457 = vmatprep.subr.mxu0 0.0
      %458 = vmatpush2.msra.mxu0 0.0
      %459 = vmatprep.subr.mxu0 0.0
      %460 = vmatpush2.msra.mxu0 0.0
      %461 = vmatprep.subr.mxu0 0.0
      %462 = vmatpush2.msra.mxu0 0.0
      %463 = vmatprep.subr.mxu0 0.0
      %464 = vmatpush2.msra.mxu0 0.0
      %465 = vmatprep.subr.mxu0 0.0
      %466 = vmatpush2.msra.mxu0 0.0
      %467 = vmatprep.subr.mxu0 0.0
      %468 = vmatpush2.msra.mxu0 0.0
      %469 = vmatprep.subr.mxu0 0.0
      %470 = vmatpush2.msra.mxu0 0.0
      %471 = vmatprep.subr.mxu0 0.0
      %472 = vmatpush2.msra.mxu0 0.0
      %473 = vmatprep.subr.mxu0 0.0
      %474 = vmatpush2.msra.mxu0 0.0
      %475 = vmatprep.subr.mxu0 0.0
      %476 = vmatpush2.msra.mxu0 0.0
      %477 = vmatprep.subr.mxu0 0.0
      %478 = vmatpush2.msra.mxu0 0.0
      %479 = vmatprep.subr.mxu0 0.0
      %480 = vmatpush2.msra.mxu0 0.0
      %481 = vmatprep.subr.mxu0 0.0
      %482 = vmatpush2.msra.mxu0 0.0
      %483 = vmatprep.subr.mxu0 0.0
      %484 = vmatpush2.msra.mxu0 0.0
      %485 = vmatprep.subr.mxu0 0.0
      %486 = vmatpush2.msra.mxu0 0.0
      %487 = vmatprep.subr.mxu0 0.0
      %488 = vmatpush2.msra.mxu0 0.0
      %489 = vmatprep.mubr.f32.mxu0 0.0
      %490 = vmatmul.mubr.f32.gmra.mxu0 %v423
      %v491 = vpop.f32.mrf.mxu0
      %v492 = vadd.f32 0.0, %v491
      %v493 = vpop.f32.mrf.mxu0
      %494 = vdwg.mxu0
      %v496 = vsel %vm421, %v294, 0
      %498 = vmatprep.subr.mxu0 0.0
      %499 = vmatpush1.msra.mxu0 0.0
      %500 = vmatprep.subr.mxu0 0.0
      %501 = vmatpush1.msra.mxu0 0.0
      %502 = vmatprep.subr.mxu0 0.0
      %503 = vmatpush1.msra.mxu0 0.0
      %504 = vmatprep.subr.mxu0 0.0
      %505 = vmatpush1.msra.mxu0 0.0
      %506 = vmatprep.subr.mxu0 0.0
      %507 = vmatpush1.msra.mxu0 0.0
      %508 = vmatprep.subr.mxu0 0.0
      %509 = vmatpush1.msra.mxu0 0.0
      %510 = vmatprep.subr.mxu0 0.0
      %511 = vmatpush1.msra.mxu0 0.0
      %512 = vmatprep.subr.mxu0 0.0
      %513 = vmatpush1.msra.mxu0 0.0
      %514 = vmatprep.subr.mxu0 0.0
      %515 = vmatpush1.msra.mxu0 0.0
      %516 = vmatprep.subr.mxu0 0.0
      %517 = vmatpush1.msra.mxu0 0.0
      %518 = vmatprep.subr.mxu0 0.0
      %519 = vmatpush1.msra.mxu0 0.0
      %520 = vmatprep.subr.mxu0 0.0
      %521 = vmatpush1.msra.mxu0 0.0
      %522 = vmatprep.subr.mxu0 0.0
      %523 = vmatpush1.msra.mxu0 0.0
      %524 = vmatprep.subr.mxu0 0.0
      %525 = vmatpush1.msra.mxu0 0.0
      %526 = vmatprep.subr.mxu0 0.0
      %527 = vmatpush1.msra.mxu0 %v416
      %528 = vmatprep.subr.mxu0 0.0
      %529 = vmatpush1.msra.mxu0 %v415
      %530 = vmatprep.subr.mxu0 0.0
      %531 = vmatpush2.msra.mxu0 0.0
      %532 = vmatprep.subr.mxu0 0.0
      %533 = vmatpush2.msra.mxu0 0.0
      %534 = vmatprep.subr.mxu0 0.0
      %535 = vmatpush2.msra.mxu0 0.0
      %536 = vmatprep.subr.mxu0 0.0
      %537 = vmatpush2.msra.mxu0 0.0
      %538 = vmatprep.subr.mxu0 0.0
      %539 = vmatpush2.msra.mxu0 0.0
      %540 = vmatprep.subr.mxu0 0.0
      %541 = vmatpush2.msra.mxu0 0.0
      %542 = vmatprep.subr.mxu0 0.0
      %543 = vmatpush2.msra.mxu0 0.0
      %544 = vmatprep.subr.mxu0 0.0
      %545 = vmatpush2.msra.mxu0 0.0
      %546 = vmatprep.subr.mxu0 0.0
      %547 = vmatpush2.msra.mxu0 0.0
      %548 = vmatprep.subr.mxu0 0.0
      %549 = vmatpush2.msra.mxu0 0.0
      %550 = vmatprep.subr.mxu0 0.0
      %551 = vmatpush2.msra.mxu0 0.0
      %552 = vmatprep.subr.mxu0 0.0
      %553 = vmatpush2.msra.mxu0 0.0
      %554 = vmatprep.subr.mxu0 0.0
      %555 = vmatpush2.msra.mxu0 0.0
      %556 = vmatprep.subr.mxu0 0.0
      %557 = vmatpush2.msra.mxu0 0.0
      %558 = vmatprep.subr.mxu0 0.0
      %559 = vmatpush2.msra.mxu0 0.0
      %560 = vmatprep.subr.mxu0 0.0
      %561 = vmatpush2.msra.mxu0 0.0
      %562 = vmatprep.mubr.f32.mxu0 0.0
      %563 = vmatmul.mubr.f32.gmra.mxu0 %v496
      %v564 = vpop.f32.mrf.mxu0
      %v565 = vadd.f32 %v492, %v564
      %v566 = vpop.f32.mrf.mxu0
      %567 = vdwg.mxu0
      %568 = vrot.lane.b32.xlu0 %v407, 127
      %v569 = vpop.permute.xlu0 %568
      %570 = vrot.lane.b32.xlu0 %v408, 127
      %v571 = vpop.permute.xlu0 %570
      %v572 = vsel %vm287, 1, 0
      %vm573 = vcmp.eq.s32.totalorder %v572, 1
      %v574 = vsel %vm573, %v569, 0.0
      %v575 = vsel %vm573, %v571, 0.0
      %v577 = vsel %vm421, %v296, 0
      %579 = vmatprep.subr.mxu0 0.0
      %580 = vmatpush1.msra.mxu0 0.0
      %581 = vmatprep.subr.mxu0 0.0
      %582 = vmatpush1.msra.mxu0 0.0
      %583 = vmatprep.subr.mxu0 0.0
      %584 = vmatpush1.msra.mxu0 0.0
      %585 = vmatprep.subr.mxu0 0.0
      %586 = vmatpush1.msra.mxu0 0.0
      %587 = vmatprep.subr.mxu0 0.0
      %588 = vmatpush1.msra.mxu0 0.0
      %589 = vmatprep.subr.mxu0 0.0
      %590 = vmatpush1.msra.mxu0 0.0
      %591 = vmatprep.subr.mxu0 0.0
      %592 = vmatpush1.msra.mxu0 0.0
      %593 = vmatprep.subr.mxu0 0.0
      %594 = vmatpush1.msra.mxu0 0.0
      %595 = vmatprep.subr.mxu0 0.0
      %596 = vmatpush1.msra.mxu0 0.0
      %597 = vmatprep.subr.mxu0 0.0
      %598 = vmatpush1.msra.mxu0 0.0
      %599 = vmatprep.subr.mxu0 0.0
      %600 = vmatpush1.msra.mxu0 0.0
      %601 = vmatprep.subr.mxu0 0.0
      %602 = vmatpush1.msra.mxu0 0.0
      %603 = vmatprep.subr.mxu0 0.0
      %604 = vmatpush1.msra.mxu0 0.0
      %605 = vmatprep.subr.mxu0 0.0
      %606 = vmatpush1.msra.mxu0 0.0
      %607 = vmatprep.subr.mxu0 0.0
      %608 = vmatpush1.msra.mxu0 %v575
      %609 = vmatprep.subr.mxu0 0.0
      %610 = vmatpush1.msra.mxu0 %v574
      %611 = vmatprep.subr.mxu0 0.0
      %612 = vmatpush2.msra.mxu0 0.0
      %613 = vmatprep.subr.mxu0 0.0
      %614 = vmatpush2.msra.mxu0 0.0
      %615 = vmatprep.subr.mxu0 0.0
      %616 = vmatpush2.msra.mxu0 0.0
      %617 = vmatprep.subr.mxu0 0.0
      %618 = vmatpush2.msra.mxu0 0.0
      %619 = vmatprep.subr.mxu0 0.0
      %620 = vmatpush2.msra.mxu0 0.0
      %621 = vmatprep.subr.mxu0 0.0
      %622 = vmatpush2.msra.mxu0 0.0
      %623 = vmatprep.subr.mxu0 0.0
      %624 = vmatpush2.msra.mxu0 0.0
      %625 = vmatprep.subr.mxu0 0.0
      %626 = vmatpush2.msra.mxu0 0.0
      %627 = vmatprep.subr.mxu0 0.0
      %628 = vmatpush2.msra.mxu0 0.0
      %629 = vmatprep.subr.mxu0 0.0
      %630 = vmatpush2.msra.mxu0 0.0
      %631 = vmatprep.subr.mxu0 0.0
      %632 = vmatpush2.msra.mxu0 0.0
      %633 = vmatprep.subr.mxu0 0.0
      %634 = vmatpush2.msra.mxu0 0.0
      %635 = vmatprep.subr.mxu0 0.0
      %636 = vmatpush2.msra.mxu0 0.0
      %637 = vmatprep.subr.mxu0 0.0
      %638 = vmatpush2.msra.mxu0 0.0
      %639 = vmatprep.subr.mxu0 0.0
      %640 = vmatpush2.msra.mxu0 0.0
      %641 = vmatprep.subr.mxu0 0.0
      %642 = vmatpush2.msra.mxu0 0.0
      %643 = vmatprep.mubr.f32.mxu0 0.0
      %644 = vmatmul.mubr.f32.gmra.mxu0 %v577
      %v645 = vpop.f32.mrf.mxu0
      %v646 = vadd.f32 0.0, %v645
      %v647 = vpop.f32.mrf.mxu0
      %648 = vdwg.mxu0
      %v649 = vadd.f32 %v565, %v646
      %v650 = vld [vmem:[%s4] sm:$0xff]
      %652 = vset.pattern.permute.xlu0 0
      %653 = vperm.xlu0 %652, %v650
      %v654 = vpop.permute.xlu0 %653
      %v656 = vadd.f32 %v649, %v654
      %v657 = vmax.f32 %v656, 0.0
      %658 = vrot.lane.b32.xlu0 %v657, 1
      %v659 = vpop.permute.xlu0 %658
      %v660 = vsel %vm414, %v659, 0.0
      %662 = vset.pattern.permute.xlu0 0
      %663 = vperm.xlu0 %662, %v297
      %v664 = vpop.permute.xlu0 %663
      %v666 = vmul.f32 %v660, %v664
      %v667 = vrot.slane %v666, 4
      %v668 = vadd.f32 %v666, %v667
      %v669 = vrot.slane %v668, 2
      %v670 = vadd.f32 %v668, %v669
      %v671 = vrot.slane %v670, 1
      %v672 = vadd.f32 %v670, %v671
      %v673 = vadd.f32 %v672, 0.0
      %v674 = vsel %vm418, %v657, 0.0
      %675 = vset.pattern.permute.xlu0 1
      %676 = vperm.xlu0 %675, %v297
      %v677 = vpop.permute.xlu0 %676
      %v679 = vmul.f32 %v674, %v677
      %v680 = vrot.slane %v679, 4
      %v681 = vadd.f32 %v679, %v680
      %v682 = vrot.slane %v681, 2
      %v683 = vadd.f32 %v681, %v682
      %v684 = vrot.slane %v683, 1
      %v685 = vadd.f32 %v683, %v684
      %v686 = vadd.f32 %v673, %v685
      %687 = vrot.lane.b32.xlu0 %v657, 127
      %v688 = vpop.permute.xlu0 %687
      %v689 = vsel %vm573, %v688, 0.0
      %690 = vset.pattern.permute.xlu0 2
      %691 = vperm.xlu0 %690, %v297
      %v692 = vpop.permute.xlu0 %691
      %v694 = vmul.f32 %v689, %v692
      %v695 = vrot.slane %v694, 4
      %v696 = vadd.f32 %v694, %v695
      %v697 = vrot.slane %v696, 2
      %v698 = vadd.f32 %v696, %v697
      %v699 = vrot.slane %v698, 1
      %v700 = vadd.f32 %v698, %v699
      %v701 = vadd.f32 %v686, %v700
      %s702 = sld [smem:[#allocation2]]
      %v703 = vstv %s702
      %v704 = vadd.f32 %v701, %v703
      %v705 = vxor.u32 %v704, 2147483648
      %v706 = vmul.f32 %v705, 1.442695
      %v707 = vpow.pop %v706
      %v708 = vadd.f32 %v707, 1.0
      %v709 = vrcp.pop %v708
      %v710 = vmul.f32 1.0, %v709
      %711 = vst [vmem:[%s269] sm:$0x1] %v710
      %p712 = scmp.lt.s32.totalorder %s19, 1
      %s713 = scalar_select %p712, %s19, 1
      %s714 = scalar_lea.vmem %s7, %s713
      // Predicated region
      $region49: #{hydrophobic_forward_core.5} parent=47 // pred_check
        %p715 = pneg %p189
      $region50: #{hydrophobic_forward_core.5} parent=47 // pred_check_branch
        %717 = sbr.rel (%p715) target = $region52
      $region51: #{hydrophobic_forward_core.5} parent=47 // pred_region
        _
      $region52: #{hydrophobic_forward_core.5} parent=47 // pred_fallthru
        _
    $region48: #{hydrophobic_forward_core.5} parent=5 // pred_fallthru
      _
    %p718 = scmp.le.s32.totalorder 2, %s14
    // Predicated region
    $region53: #{hydrophobic_forward_core.5} parent=5 // pred_check
      %p719 = pneg %p718
    $region54: #{hydrophobic_forward_core.5} parent=5 // pred_check_branch
      %721 = sbr.rel (%p719) target = $region56
    $region55: #{hydrophobic_forward_core.5} parent=5 // pred_region
      %s722 = ssub.s32 %s14, 2
      // Predicated region
      $region57: #{hydrophobic_forward_core.5} parent=55 // pred_check
        %p723 = pneg %p195
      $region58: #{hydrophobic_forward_core.5} parent=55 // pred_check_branch
        %725 = sbr.rel (%p723) target = $region60
      $region59: #{hydrophobic_forward_core.5} parent=55 // pred_region
        %p726 = scmp.lt.s32.totalorder %s20, 1
        %s727 = scalar_select %p726, %s20, 1
        %s728 = scalar_lea.vmem %s7, %s727
      $region60: #{hydrophobic_forward_core.5} parent=55 // pred_fallthru
        _
    $region56: #{hydrophobic_forward_core.5} parent=5 // pred_fallthru
      _
  $region6: #{hydrophobic_forward_core.5} parent=0 // loop_footer
    %s18 = sadd.s32 1, %s14
  $region7: #{hydrophobic_forward_core.5} parent=0 // loop_footer_branch
    %13 = sbr.rel target = $region3
  $region8: #{hydrophobic_forward_core.5} parent=0 // loop_exit
    _

</llo_original>
